<compile_context>
chip_gen: v6e
topology: v6e:2x2x1
jax: 0.10.0
libtpu: 0.0.40
codegen_flags: <defaults>
</compile_context>

<pallas_src>
import jax
import jax.numpy as jnp
from jax.experimental import pallas as pl
from jax.experimental.pallas import tpu as pltpu

IN_F = 1024
H1 = 512
H2 = 256
OUT_PAD = 128   # true output dim is 1; output tile padded to one full lane width


def discriminator_kernel(x_ref, w1_ref, b1_ref, w2_ref, b2_ref, w3_ref, b3_ref,
                         o_ref):
    # x_ref : (1, 1024) f32
    # w1_ref: (1024, 512) bf16   b1_ref: (1, 512) f32
    # w2_ref: (512, 256) bf16    b2_ref: (1, 256) f32
    # w3_ref: (1, 256)  f32      b3_ref: (1, 1)   f32 in SMEM
    # o_ref : (1, 128)  f32      (real output is lane 0)
    x = x_ref[...]

    w1 = w1_ref[...].astype(jnp.float32)
    h1 = jnp.dot(x, w1, preferred_element_type=jnp.float32) + b1_ref[...]
    h1 = jnp.where(h1 > 0, h1, 0.2 * h1)            # LeakyReLU(0.2)

    w2 = w2_ref[...].astype(jnp.float32)
    h2 = jnp.dot(h1, w2, preferred_element_type=jnp.float32) + b2_ref[...]
    h2 = jnp.where(h2 > 0, h2, 0.2 * h2)            # LeakyReLU(0.2)

    # Final 256 -> 1 layer: VPU multiply + lane reduction (no padded MXU pass).
    z = jnp.sum(h2 * w3_ref[...], axis=-1, keepdims=True) + b3_ref[0, 0]  # (1,1)
    sig = 1.0 / (1.0 + jnp.exp(-z))                 # exact sigmoid (EUP exp)

    o_ref[...] = jnp.broadcast_to(sig, o_ref.shape)


def make_params(key):
    """Deterministic init mirroring nn.Linear, with layout PRE-BAKED for the
    kernel: weights transposed to (in, out) (w1/w2 in bf16), biases as rows."""
    ks = jax.random.split(key, 6)

    def uinit(k, shape, fan_in):
        bound = 1.0 / jnp.sqrt(fan_in)
        return jax.random.uniform(k, shape, jnp.float32, -bound, bound)

    # Canonical nn.Linear shapes (out, in) / (out,)
    w1 = uinit(ks[0], (H1, IN_F), IN_F)   # (512, 1024)
    b1 = uinit(ks[1], (H1,), IN_F)        # (512,)
    w2 = uinit(ks[2], (H2, H1), H1)       # (256, 512)
    b2 = uinit(ks[3], (H2,), H1)          # (256,)
    w3 = uinit(ks[4], (1, H2), H2)        # (1, 256)
    b3 = uinit(ks[5], (1,), H2)           # (1,)

    # Pre-bake kernel layout once (no per-call transposes / padding).
    w1_t = w1.T.astype(jnp.bfloat16)      # (1024, 512) bf16
    b1_r = b1.reshape(1, H1)              # (1, 512)    f32
    w2_t = w2.T.astype(jnp.bfloat16)      # (512, 256)  bf16
    b2_r = b2.reshape(1, H2)              # (1, 256)    f32
    w3_r = w3.astype(jnp.float32)         # (1, 256)    f32 (tiny, stays exact)
    b3_s = b3.reshape(1, 1)               # (1, 1)      f32 (SMEM scalar)
    return (w1_t, b1_r, w2_t, b2_r, w3_r, b3_s)


def discriminator_forward(img, params):
    """img: tensor whose size(0) == numel == 1024 (a 1024-element vector)."""
    w1_t, b1_r, w2_t, b2_r, w3_r, b3_s = params

    # img.view(img.size(0)) -> 1-D length-1024, lifted to a (1, 1024) row.
    x = img.reshape(img.shape[0]).astype(jnp.float32).reshape(1, IN_F)

    full = lambda shape: pl.BlockSpec(shape, lambda: tuple(0 for _ in shape))

    out_padded = pl.pallas_call(
        discriminator_kernel,
        out_shape=jax.ShapeDtypeStruct((1, OUT_PAD), jnp.float32),
        grid=(),
        in_specs=[
            full((1, IN_F)),                               # x
            full((IN_F, H1)), full((1, H1)),               # w1 (bf16), b1
            full((H1, H2)), full((1, H2)),                 # w2 (bf16), b2
            full((1, H2)),                                 # w3 row (f32)
            pl.BlockSpec(memory_space=pltpu.SMEM),         # b3 scalar
        ],
        out_specs=full((1, OUT_PAD)),
        compiler_params=pltpu.CompilerParams(vmem_limit_bytes=16 << 20),
    )(x, w1_t, b1_r, w2_t, b2_r, w3_r, b3_s)

    # True output is lane 0 -> shape (1,), matching the torch module.
    return out_padded[0, 0:1]


def discriminator_ref(img, params):
    """Pure-JAX reference using the same (pre-baked) parameters."""
    w1_t, b1_r, w2_t, b2_r, w3_r, b3_s = params
    x = img.reshape(img.shape[0]).astype(jnp.float32)
    h = jnp.dot(x, w1_t.astype(jnp.float32)) + b1_r[0]
    h = jnp.where(h > 0, h, 0.2 * h)
    h = jnp.dot(h, w2_t.astype(jnp.float32)) + b2_r[0]
    h = jnp.where(h > 0, h, 0.2 * h)
    z = jnp.dot(h, w3_r[0]) + b3_s[0, 0]
    return jax.nn.sigmoid(z).reshape(1)


if __name__ == "__main__":
    key = jax.random.PRNGKey(0)
    pkey, xkey = jax.random.split(key)
    params = make_params(pkey)

    # Input: a 1024-element vector (the only shape the reference forward accepts).
    img = jax.random.normal(xkey, (IN_F,), jnp.float32)

    out = discriminator_forward(img, params)
    out = jax.block_until_ready(out)

    ref = discriminator_ref(img, params)
    assert out.shape == (1,), out.shape
    assert jnp.allclose(out, ref, atol=1e-5, rtol=1e-5), (out, ref)

    print("KERNEL_OK")
</pallas_src>

<mosaic_0001>
module attributes {stable_mosaic.version = 11 : i64} {
  func.func @discriminator_kernel(%arg0: memref<1x1024xf32, #tpu.memory_space<vmem>>, %arg1: memref<1024x512xbf16, #tpu.memory_space<vmem>>, %arg2: memref<1x512xf32, #tpu.memory_space<vmem>>, %arg3: memref<512x256xbf16, #tpu.memory_space<vmem>>, %arg4: memref<1x256xf32, #tpu.memory_space<vmem>>, %arg5: memref<1x256xf32, #tpu.memory_space<vmem>>, %arg6: memref<1x1xf32, #tpu.memory_space<smem>>, %arg7: memref<1x128xf32, #tpu.memory_space<vmem>>) attributes {dimension_semantics = [], scalar_prefetch = 0 : i64, scratch_operands = 0 : i64, tpu.core_type = #tpu.core_type<tc>} {
    %c0 = arith.constant 0 : index
    %c0_0 = arith.constant 0 : index
    %0 = vector.load %arg0[%c0, %c0_0] : memref<1x1024xf32, #tpu.memory_space<vmem>>, vector<1x1024xf32>
    %c0_1 = arith.constant 0 : index
    %c0_2 = arith.constant 0 : index
    %1 = vector.load %arg1[%c0_1, %c0_2] : memref<1024x512xbf16, #tpu.memory_space<vmem>>, vector<1024x512xbf16>
    %2 = arith.extf %1 : vector<1024x512xbf16> to vector<1024x512xf32>
    %cst = arith.constant dense<0.000000e+00> : vector<1x512xf32>
    %3 = tpu.matmul %0, %2, %cst {dimension_numbers = #tpu.dot_dimension_numbers<[1], [0], [0], [1], [0, 0, 1, 1], [], []>} : vector<1x1024xf32>, vector<1024x512xf32>, vector<1x512xf32> -> vector<1x512xf32>
    %c0_3 = arith.constant 0 : index
    %c0_4 = arith.constant 0 : index
    %4 = vector.load %arg2[%c0_3, %c0_4] : memref<1x512xf32, #tpu.memory_space<vmem>>, vector<1x512xf32>
    %5 = arith.addf %3, %4 : vector<1x512xf32>
    %cst_5 = arith.constant 0.000000e+00 : f32
    %6 = vector.broadcast %cst_5 : f32 to vector<1x512xf32>
    %7 = arith.cmpf ogt, %5, %6 : vector<1x512xf32>
    %cst_6 = arith.constant 2.000000e-01 : f32
    %8 = vector.broadcast %cst_6 : f32 to vector<1x512xf32>
    %9 = arith.mulf %8, %5 : vector<1x512xf32>
    %10 = arith.select %7, %5, %9 : vector<1x512xi1>, vector<1x512xf32>
    %c0_7 = arith.constant 0 : index
    %c0_8 = arith.constant 0 : index
    %11 = vector.load %arg3[%c0_7, %c0_8] : memref<512x256xbf16, #tpu.memory_space<vmem>>, vector<512x256xbf16>
    %12 = arith.extf %11 : vector<512x256xbf16> to vector<512x256xf32>
    %cst_9 = arith.constant dense<0.000000e+00> : vector<1x256xf32>
    %13 = tpu.matmul %10, %12, %cst_9 {dimension_numbers = #tpu.dot_dimension_numbers<[1], [0], [0], [1], [0, 0, 1, 1], [], []>} : vector<1x512xf32>, vector<512x256xf32>, vector<1x256xf32> -> vector<1x256xf32>
    %c0_10 = arith.constant 0 : index
    %c0_11 = arith.constant 0 : index
    %14 = vector.load %arg4[%c0_10, %c0_11] : memref<1x256xf32, #tpu.memory_space<vmem>>, vector<1x256xf32>
    %15 = arith.addf %13, %14 : vector<1x256xf32>
    %cst_12 = arith.constant 0.000000e+00 : f32
    %16 = vector.broadcast %cst_12 : f32 to vector<1x256xf32>
    %17 = arith.cmpf ogt, %15, %16 : vector<1x256xf32>
    %cst_13 = arith.constant 2.000000e-01 : f32
    %18 = vector.broadcast %cst_13 : f32 to vector<1x256xf32>
    %19 = arith.mulf %18, %15 : vector<1x256xf32>
    %20 = arith.select %17, %15, %19 : vector<1x256xi1>, vector<1x256xf32>
    %c0_14 = arith.constant 0 : index
    %c0_15 = arith.constant 0 : index
    %21 = vector.load %arg5[%c0_14, %c0_15] : memref<1x256xf32, #tpu.memory_space<vmem>>, vector<1x256xf32>
    %22 = arith.mulf %20, %21 : vector<1x256xf32>
    %cst_16 = arith.constant dense<0.000000e+00> : vector<1xf32>
    %23 = vector.multi_reduction <add>, %22, %cst_16 [1] : vector<1x256xf32> to vector<1xf32>
    %24 = vector.shape_cast %23 : vector<1xf32> to vector<1x1xf32>
    %c0_17 = arith.constant 0 : index
    %c0_18 = arith.constant 0 : index
    %25 = memref.load %arg6[%c0_17, %c0_18] : memref<1x1xf32, #tpu.memory_space<smem>>
    %26 = vector.broadcast %25 : f32 to vector<1x1xf32>
    %27 = arith.addf %24, %26 : vector<1x1xf32>
    %cst_19 = arith.constant 0.000000e+00 : f32
    %28 = vector.broadcast %cst_19 : f32 to vector<1x1xf32>
    %29 = arith.subf %28, %27 : vector<1x1xf32>
    %30 = math.exp %29 : vector<1x1xf32>
    %cst_20 = arith.constant 1.000000e+00 : f32
    %31 = vector.broadcast %cst_20 : f32 to vector<1x1xf32>
    %32 = arith.addf %31, %30 : vector<1x1xf32>
    %cst_21 = arith.constant 1.000000e+00 : f32
    %33 = vector.broadcast %cst_21 : f32 to vector<1x1xf32>
    %34 = arith.divf %33, %32 : vector<1x1xf32>
    %35 = vector.shape_cast %34 : vector<1x1xf32> to vector<1x1xf32>
    %36 = vector.broadcast %35 : vector<1x1xf32> to vector<1x128xf32>
    %c0_22 = arith.constant 0 : index
    %c0_23 = arith.constant 0 : index
    %37 = vector.load %arg7[%c0_22, %c0_23] : memref<1x128xf32, #tpu.memory_space<vmem>>, vector<1x128xf32>
    tpu.vector_store %arg7[%c0_22, %c0_23], %36 {strides = array<i32>} : memref<1x128xf32, #tpu.memory_space<vmem>>, vector<1x128xf32>,
    return
  }
}

</mosaic_0001>

<llo_original>
// kernel: tpu_custom_call.1
$region0: #{tpu_custom_call.1}
  #allocation0 [shape = 'u32[]', space=smem, size = 0x4, offset = 0x4, fixed_abs, tag = 'smem constant byte address 0x4 - core index']
  #allocation1 [shape = 'u32[144,128]{1,0:T(1,128)}', space=vmem, size = 0x12000, scoped, tag = 'internal scratch']
  #allocation2 [shape = 'f32[1,1]{1,0:T(1,128)S(6)}', space=smem, size = 0x200, scoped, tag = 'scoped memory for tpu_custom_call.1']
  %s0 = inlined_call_operand.hbm [shape: f32[1,1024], index: 0, kind: input, shape index: {}]
  %s1 = inlined_call_operand.hbm [shape: bf16[1024,512], index: 1, kind: input, shape index: {}]
  %s2 = inlined_call_operand.vmem [shape: f32[1,512], index: 2, kind: input, shape index: {}]
  %s3 = inlined_call_operand.hbm [shape: bf16[512,256], index: 3, kind: input, shape index: {}]
  %s4 = inlined_call_operand.vmem [shape: f32[1,256], index: 4, kind: input, shape index: {}]
  %s5 = inlined_call_operand.vmem [shape: f32[1,256], index: 5, kind: input, shape index: {}]
  %s6 = inlined_call_operand.<no memory space> [shape: f32[1,1], index: 6, kind: input, shape index: {}]
  %s7 = inlined_call_operand.hbm [shape: f32[1,128], index: 7, kind: output, shape index: {}]
  %s8 = sld [smem:[#allocation0]]
  $region50: #{tpu_custom_call.1} parent=0
    _
  %s10 = ssub.s32 1, %s8
  %s11 = scalar_select 0, %s10, %s8
  %12 = sst [smem:[#allocation2]] %s6
  $region1: #{tpu_custom_call.1} parent=0
    #allocation3 [shape = 'u8[4096]{0}', space=vmem, size = 0x1000, scoped, tag = 'input window, operand 0, single buffered']
    #allocation4 [shape = 's32[1]{0}', space=sflag, size = 0x4, scoped, tag = 'scoped memory for tpu_custom_call.1']
    #allocation5 [shape = 's32[1]{0}', space=sflag, size = 0x4, scoped, tag = 'scoped memory for tpu_custom_call.1']
    #allocation6 [shape = 'u8[1048576]{0}', space=vmem, size = 0x100000, scoped, tag = 'input window, operand 1, single buffered']
    #allocation7 [shape = 's32[1]{0}', space=sflag, size = 0x4, scoped, tag = 'scoped memory for tpu_custom_call.1']
    #allocation8 [shape = 'u8[262144]{0}', space=vmem, size = 0x40000, scoped, tag = 'input window, operand 3, single buffered']
    #allocation9 [shape = 'u8[512]{0}', space=vmem, size = 0x400, scoped, tag = 'output window, operand 0, single buffered']
    %13 = vsyncpa [#allocation4], 0
    %14 = vsyncpa [#allocation7], 0
    %15 = vsyncpa [#allocation5], 0
    // Predicated region
    $region2: #{tpu_custom_call.1} parent=1 // pred_check
      _
    $region3: #{tpu_custom_call.1} parent=1 // pred_check_branch
      %17 = sbr.rel (0) target = $region5
    $region4: #{tpu_custom_call.1} parent=1 // pred_region
      %s19 = ssub.s32 128, 128
      %20 = vsyncadd [#allocation4], %s19
      %s22 = sshll.u32 [#allocation3], 4
      %s23 = int_to_ptr.vmem [resolvable:$true] %s22
      %25 = dma.hbm_to_vmem [thread:$0]  %s0, 128, %s23, [#allocation4]
    $region5: #{tpu_custom_call.1} parent=1 // pred_fallthru
      _
    // Predicated region
    $region6: #{tpu_custom_call.1} parent=1 // pred_check
      _
    $region7: #{tpu_custom_call.1} parent=1 // pred_check_branch
      %27 = sbr.rel (0) target = $region9
    $region8: #{tpu_custom_call.1} parent=1 // pred_region
      %s29 = ssub.s32 32768, 32768
      %30 = vsyncadd [#allocation7], %s29
      %s31 = sshll.u32 [#allocation6], 4
      %s32 = int_to_ptr.vmem [resolvable:$true] %s31
      %37 = dma.hbm_to_vmem [thread:$0]  %s1, 32768, %s32, [#allocation7], 256, 256, 16
    $region9: #{tpu_custom_call.1} parent=1 // pred_fallthru
      _
    // Predicated region
    $region10: #{tpu_custom_call.1} parent=1 // pred_check
      _
    $region11: #{tpu_custom_call.1} parent=1 // pred_check_branch
      %39 = sbr.rel (0) target = $region13
    $region12: #{tpu_custom_call.1} parent=1 // pred_region
      _
    $region13: #{tpu_custom_call.1} parent=1 // pred_fallthru
      _
    // Predicated region
    $region14: #{tpu_custom_call.1} parent=1 // pred_check
      _
    $region15: #{tpu_custom_call.1} parent=1 // pred_check_branch
      %41 = sbr.rel (0) target = $region17
    $region16: #{tpu_custom_call.1} parent=1 // pred_region
      %s43 = ssub.s32 8192, 8192
      %44 = vsyncadd [#allocation7], %s43
      %s45 = sshll.u32 [#allocation8], 4
      %s46 = int_to_ptr.vmem [resolvable:$true] %s45
      %51 = dma.hbm_to_vmem [thread:$0]  %s3, 8192, %s46, [#allocation7], 128, 128, 8
    $region17: #{tpu_custom_call.1} parent=1 // pred_fallthru
      _
    // Predicated region
    $region18: #{tpu_custom_call.1} parent=1 // pred_check
      _
    $region19: #{tpu_custom_call.1} parent=1 // pred_check_branch
      %53 = sbr.rel (0) target = $region21
    $region20: #{tpu_custom_call.1} parent=1 // pred_region
      _
    $region21: #{tpu_custom_call.1} parent=1 // pred_fallthru
      _
    // Predicated region
    $region22: #{tpu_custom_call.1} parent=1 // pred_check
      _
    $region23: #{tpu_custom_call.1} parent=1 // pred_check_branch
      %55 = sbr.rel (0) target = $region25
    $region24: #{tpu_custom_call.1} parent=1 // pred_region
      _
    $region25: #{tpu_custom_call.1} parent=1 // pred_fallthru
      _
    // Predicated region
    $region26: #{tpu_custom_call.1} parent=1 // pred_check
      _
    $region27: #{tpu_custom_call.1} parent=1 // pred_check_branch
      %57 = sbr.rel (0) target = $region29
    $region28: #{tpu_custom_call.1} parent=1 // pred_region
      _
    $region29: #{tpu_custom_call.1} parent=1 // pred_fallthru
      _
    // Predicated region
    $region30: #{tpu_custom_call.1} parent=1 // pred_check
      _
    $region31: #{tpu_custom_call.1} parent=1 // pred_check_branch
      %59 = sbr.rel (0) target = $region33
    $region32: #{tpu_custom_call.1} parent=1 // pred_region
      %60 = dma.done [#allocation4], 128
    $region33: #{tpu_custom_call.1} parent=1 // pred_fallthru
      _
    // Predicated region
    $region34: #{tpu_custom_call.1} parent=1 // pred_check
      _
    $region35: #{tpu_custom_call.1} parent=1 // pred_check_branch
      %62 = sbr.rel (0) target = $region37
    $region36: #{tpu_custom_call.1} parent=1 // pred_region
      %63 = dma.done [#allocation7], 32768
    $region37: #{tpu_custom_call.1} parent=1 // pred_fallthru
      _
    // Predicated region
    $region38: #{tpu_custom_call.1} parent=1 // pred_check
      _
    $region39: #{tpu_custom_call.1} parent=1 // pred_check_branch
      %65 = sbr.rel (0) target = $region41
    $region40: #{tpu_custom_call.1} parent=1 // pred_region
      %66 = dma.done [#allocation7], 8192
    $region41: #{tpu_custom_call.1} parent=1 // pred_fallthru
      _
    %v67 = vld [vmem:[#allocation3] sm:$0xff]
    %v68 = vld [vmem:[#allocation6] sm:$0xff]
    %v69 = vld [vmem:[#allocation6 + $0x8] sm:$0xff]
    %v70 = vld [vmem:[#allocation6 + $0x10] sm:$0xff]
    %v71 = vld [vmem:[#allocation6 + $0x18] sm:$0xff]
    %v72 = vld [vmem:[#allocation6 + $0x20] sm:$0xff]
    %v73 = vld [vmem:[#allocation6 + $0x28] sm:$0xff]
    %v74 = vld [vmem:[#allocation6 + $0x30] sm:$0xff]
    %v75 = vld [vmem:[#allocation6 + $0x38] sm:$0xff]
    %v76 = vld [vmem:[#allocation6 + $0x40] sm:$0xff]
    %v77 = vld [vmem:[#allocation6 + $0x48] sm:$0xff]
    %v78 = vld [vmem:[#allocation6 + $0x50] sm:$0xff]
    %v79 = vld [vmem:[#allocation6 + $0x58] sm:$0xff]
    %v80 = vld [vmem:[#allocation6 + $0x60] sm:$0xff]
    %v81 = vld [vmem:[#allocation6 + $0x68] sm:$0xff]
    %v82 = vld [vmem:[#allocation6 + $0x70] sm:$0xff]
    %v83 = vld [vmem:[#allocation6 + $0x78] sm:$0xff]
    %v84 = vld [vmem:[#allocation6 + $0x80] sm:$0xff]
    %v85 = vld [vmem:[#allocation6 + $0x88] sm:$0xff]
    %v86 = vld [vmem:[#allocation6 + $0x90] sm:$0xff]
    %v87 = vld [vmem:[#allocation6 + $0x98] sm:$0xff]
    %v88 = vld [vmem:[#allocation6 + $0xa0] sm:$0xff]
    %v89 = vld [vmem:[#allocation6 + $0xa8] sm:$0xff]
    %v90 = vld [vmem:[#allocation6 + $0xb0] sm:$0xff]
    %v91 = vld [vmem:[#allocation6 + $0xb8] sm:$0xff]
    %v92 = vld [vmem:[#allocation6 + $0xc0] sm:$0xff]
    %v93 = vld [vmem:[#allocation6 + $0xc8] sm:$0xff]
    %v94 = vld [vmem:[#allocation6 + $0xd0] sm:$0xff]
    %v95 = vld [vmem:[#allocation6 + $0xd8] sm:$0xff]
    %v96 = vld [vmem:[#allocation6 + $0xe0] sm:$0xff]
    %v97 = vld [vmem:[#allocation6 + $0xe8] sm:$0xff]
    %v98 = vld [vmem:[#allocation6 + $0xf0] sm:$0xff]
    %v99 = vld [vmem:[#allocation6 + $0xf8] sm:$0xff]
    %v100 = vld [vmem:[#allocation6 + $0x100] sm:$0xff]
    %v101 = vld [vmem:[#allocation6 + $0x108] sm:$0xff]
    %v102 = vld [vmem:[#allocation6 + $0x110] sm:$0xff]
    %v103 = vld [vmem:[#allocation6 + $0x118] sm:$0xff]
    %v104 = vld [vmem:[#allocation6 + $0x120] sm:$0xff]
    %v105 = vld [vmem:[#allocation6 + $0x128] sm:$0xff]
    %v106 = vld [vmem:[#allocation6 + $0x130] sm:$0xff]
    %v107 = vld [vmem:[#allocation6 + $0x138] sm:$0xff]
    %v108 = vld [vmem:[#allocation6 + $0x140] sm:$0xff]
    %v109 = vld [vmem:[#allocation6 + $0x148] sm:$0xff]
    %v110 = vld [vmem:[#allocation6 + $0x150] sm:$0xff]
    %v111 = vld [vmem:[#allocation6 + $0x158] sm:$0xff]
    %v112 = vld [vmem:[#allocation6 + $0x160] sm:$0xff]
    %v113 = vld [vmem:[#allocation6 + $0x168] sm:$0xff]
    %v114 = vld [vmem:[#allocation6 + $0x170] sm:$0xff]
    %v115 = vld [vmem:[#allocation6 + $0x178] sm:$0xff]
    %v116 = vld [vmem:[#allocation6 + $0x180] sm:$0xff]
    %v117 = vld [vmem:[#allocation6 + $0x188] sm:$0xff]
    %v118 = vld [vmem:[#allocation6 + $0x190] sm:$0xff]
    %v119 = vld [vmem:[#allocation6 + $0x198] sm:$0xff]
    %v120 = vld [vmem:[#allocation6 + $0x1a0] sm:$0xff]
    %v121 = vld [vmem:[#allocation6 + $0x1a8] sm:$0xff]
    %v122 = vld [vmem:[#allocation6 + $0x1b0] sm:$0xff]
    %v123 = vld [vmem:[#allocation6 + $0x1b8] sm:$0xff]
    %v124 = vld [vmem:[#allocation6 + $0x1c0] sm:$0xff]
    %v125 = vld [vmem:[#allocation6 + $0x1c8] sm:$0xff]
    %v126 = vld [vmem:[#allocation6 + $0x1d0] sm:$0xff]
    %v127 = vld [vmem:[#allocation6 + $0x1d8] sm:$0xff]
    %v128 = vld [vmem:[#allocation6 + $0x1e0] sm:$0xff]
    %v129 = vld [vmem:[#allocation6 + $0x1e8] sm:$0xff]
    %v130 = vld [vmem:[#allocation6 + $0x1f0] sm:$0xff]
    %v131 = vld [vmem:[#allocation6 + $0x1f8] sm:$0xff]
    %v132 = vld [vmem:[#allocation6 + $0x200] sm:$0xff]
    %v133 = vld [vmem:[#allocation6 + $0x208] sm:$0xff]
    %v134 = vld [vmem:[#allocation6 + $0x210] sm:$0xff]
    %v135 = vld [vmem:[#allocation6 + $0x218] sm:$0xff]
    %v136 = vld [vmem:[#allocation6 + $0x220] sm:$0xff]
    %v137 = vld [vmem:[#allocation6 + $0x228] sm:$0xff]
    %v138 = vld [vmem:[#allocation6 + $0x230] sm:$0xff]
    %v139 = vld [vmem:[#allocation6 + $0x238] sm:$0xff]
    %v140 = vld [vmem:[#allocation6 + $0x240] sm:$0xff]
    %v141 = vld [vmem:[#allocation6 + $0x248] sm:$0xff]
    %v142 = vld [vmem:[#allocation6 + $0x250] sm:$0xff]
    %v143 = vld [vmem:[#allocation6 + $0x258] sm:$0xff]
    %v144 = vld [vmem:[#allocation6 + $0x260] sm:$0xff]
    %v145 = vld [vmem:[#allocation6 + $0x268] sm:$0xff]
    %v146 = vld [vmem:[#allocation6 + $0x270] sm:$0xff]
    %v147 = vld [vmem:[#allocation6 + $0x278] sm:$0xff]
    %v148 = vld [vmem:[#allocation6 + $0x280] sm:$0xff]
    %v149 = vld [vmem:[#allocation6 + $0x288] sm:$0xff]
    %v150 = vld [vmem:[#allocation6 + $0x290] sm:$0xff]
    %v151 = vld [vmem:[#allocation6 + $0x298] sm:$0xff]
    %v152 = vld [vmem:[#allocation6 + $0x2a0] sm:$0xff]
    %v153 = vld [vmem:[#allocation6 + $0x2a8] sm:$0xff]
    %v154 = vld [vmem:[#allocation6 + $0x2b0] sm:$0xff]
    %v155 = vld [vmem:[#allocation6 + $0x2b8] sm:$0xff]
    %v156 = vld [vmem:[#allocation6 + $0x2c0] sm:$0xff]
    %v157 = vld [vmem:[#allocation6 + $0x2c8] sm:$0xff]
    %v158 = vld [vmem:[#allocation6 + $0x2d0] sm:$0xff]
    %v159 = vld [vmem:[#allocation6 + $0x2d8] sm:$0xff]
    %v160 = vld [vmem:[#allocation6 + $0x2e0] sm:$0xff]
    %v161 = vld [vmem:[#allocation6 + $0x2e8] sm:$0xff]
    %v162 = vld [vmem:[#allocation6 + $0x2f0] sm:$0xff]
    %v163 = vld [vmem:[#allocation6 + $0x2f8] sm:$0xff]
    %v164 = vld [vmem:[#allocation6 + $0x300] sm:$0xff]
    %v165 = vld [vmem:[#allocation6 + $0x308] sm:$0xff]
    %v166 = vld [vmem:[#allocation6 + $0x310] sm:$0xff]
    %v167 = vld [vmem:[#allocation6 + $0x318] sm:$0xff]
    %v168 = vld [vmem:[#allocation6 + $0x320] sm:$0xff]
    %v169 = vld [vmem:[#allocation6 + $0x328] sm:$0xff]
    %v170 = vld [vmem:[#allocation6 + $0x330] sm:$0xff]
    %v171 = vld [vmem:[#allocation6 + $0x338] sm:$0xff]
    %v172 = vld [vmem:[#allocation6 + $0x340] sm:$0xff]
    %v173 = vld [vmem:[#allocation6 + $0x348] sm:$0xff]
    %v174 = vld [vmem:[#allocation6 + $0x350] sm:$0xff]
    %v175 = vld [vmem:[#allocation6 + $0x358] sm:$0xff]
    %v176 = vld [vmem:[#allocation6 + $0x360] sm:$0xff]
    %v177 = vld [vmem:[#allocation6 + $0x368] sm:$0xff]
    %v178 = vld [vmem:[#allocation6 + $0x370] sm:$0xff]
    %v179 = vld [vmem:[#allocation6 + $0x378] sm:$0xff]
    %v180 = vld [vmem:[#allocation6 + $0x380] sm:$0xff]
    %v181 = vld [vmem:[#allocation6 + $0x388] sm:$0xff]
    %v182 = vld [vmem:[#allocation6 + $0x390] sm:$0xff]
    %v183 = vld [vmem:[#allocation6 + $0x398] sm:$0xff]
    %v184 = vld [vmem:[#allocation6 + $0x3a0] sm:$0xff]
    %v185 = vld [vmem:[#allocation6 + $0x3a8] sm:$0xff]
    %v186 = vld [vmem:[#allocation6 + $0x3b0] sm:$0xff]
    %v187 = vld [vmem:[#allocation6 + $0x3b8] sm:$0xff]
    %v188 = vld [vmem:[#allocation6 + $0x3c0] sm:$0xff]
    %v189 = vld [vmem:[#allocation6 + $0x3c8] sm:$0xff]
    %v190 = vld [vmem:[#allocation6 + $0x3d0] sm:$0xff]
    %v191 = vld [vmem:[#allocation6 + $0x3d8] sm:$0xff]
    %v192 = vld [vmem:[#allocation6 + $0x3e0] sm:$0xff]
    %v193 = vld [vmem:[#allocation6 + $0x3e8] sm:$0xff]
    %v194 = vld [vmem:[#allocation6 + $0x3f0] sm:$0xff]
    %v195 = vld [vmem:[#allocation6 + $0x3f8] sm:$0xff]
    %v196 = vld [vmem:[#allocation6 + $0x400] sm:$0xff]
    %v197 = vld [vmem:[#allocation6 + $0x408] sm:$0xff]
    %v198 = vld [vmem:[#allocation6 + $0x410] sm:$0xff]
    %v199 = vld [vmem:[#allocation6 + $0x418] sm:$0xff]
    %v200 = vld [vmem:[#allocation6 + $0x420] sm:$0xff]
    %v201 = vld [vmem:[#allocation6 + $0x428] sm:$0xff]
    %v202 = vld [vmem:[#allocation6 + $0x430] sm:$0xff]
    %v203 = vld [vmem:[#allocation6 + $0x438] sm:$0xff]
    %v204 = vld [vmem:[#allocation6 + $0x440] sm:$0xff]
    %v205 = vld [vmem:[#allocation6 + $0x448] sm:$0xff]
    %v206 = vld [vmem:[#allocation6 + $0x450] sm:$0xff]
    %v207 = vld [vmem:[#allocation6 + $0x458] sm:$0xff]
    %v208 = vld [vmem:[#allocation6 + $0x460] sm:$0xff]
    %v209 = vld [vmem:[#allocation6 + $0x468] sm:$0xff]
    %v210 = vld [vmem:[#allocation6 + $0x470] sm:$0xff]
    %v211 = vld [vmem:[#allocation6 + $0x478] sm:$0xff]
    %v212 = vld [vmem:[#allocation6 + $0x480] sm:$0xff]
    %v213 = vld [vmem:[#allocation6 + $0x488] sm:$0xff]
    %v214 = vld [vmem:[#allocation6 + $0x490] sm:$0xff]
    %v215 = vld [vmem:[#allocation6 + $0x498] sm:$0xff]
    %v216 = vld [vmem:[#allocation6 + $0x4a0] sm:$0xff]
    %v217 = vld [vmem:[#allocation6 + $0x4a8] sm:$0xff]
    %v218 = vld [vmem:[#allocation6 + $0x4b0] sm:$0xff]
    %v219 = vld [vmem:[#allocation6 + $0x4b8] sm:$0xff]
    %v220 = vld [vmem:[#allocation6 + $0x4c0] sm:$0xff]
    %v221 = vld [vmem:[#allocation6 + $0x4c8] sm:$0xff]
    %v222 = vld [vmem:[#allocation6 + $0x4d0] sm:$0xff]
    %v223 = vld [vmem:[#allocation6 + $0x4d8] sm:$0xff]
    %v224 = vld [vmem:[#allocation6 + $0x4e0] sm:$0xff]
    %v225 = vld [vmem:[#allocation6 + $0x4e8] sm:$0xff]
    %v226 = vld [vmem:[#allocation6 + $0x4f0] sm:$0xff]
    %v227 = vld [vmem:[#allocation6 + $0x4f8] sm:$0xff]
    %v228 = vld [vmem:[#allocation6 + $0x500] sm:$0xff]
    %v229 = vld [vmem:[#allocation6 + $0x508] sm:$0xff]
    %v230 = vld [vmem:[#allocation6 + $0x510] sm:$0xff]
    %v231 = vld [vmem:[#allocation6 + $0x518] sm:$0xff]
    %v232 = vld [vmem:[#allocation6 + $0x520] sm:$0xff]
    %v233 = vld [vmem:[#allocation6 + $0x528] sm:$0xff]
    %v234 = vld [vmem:[#allocation6 + $0x530] sm:$0xff]
    %v235 = vld [vmem:[#allocation6 + $0x538] sm:$0xff]
    %v236 = vld [vmem:[#allocation6 + $0x540] sm:$0xff]
    %v237 = vld [vmem:[#allocation6 + $0x548] sm:$0xff]
    %v238 = vld [vmem:[#allocation6 + $0x550] sm:$0xff]
    %v239 = vld [vmem:[#allocation6 + $0x558] sm:$0xff]
    %v240 = vld [vmem:[#allocation6 + $0x560] sm:$0xff]
    %v241 = vld [vmem:[#allocation6 + $0x568] sm:$0xff]
    %v242 = vld [vmem:[#allocation6 + $0x570] sm:$0xff]
    %v243 = vld [vmem:[#allocation6 + $0x578] sm:$0xff]
    %v244 = vld [vmem:[#allocation6 + $0x580] sm:$0xff]
    %v245 = vld [vmem:[#allocation6 + $0x588] sm:$0xff]
    %v246 = vld [vmem:[#allocation6 + $0x590] sm:$0xff]
    %v247 = vld [vmem:[#allocation6 + $0x598] sm:$0xff]
    %v248 = vld [vmem:[#allocation6 + $0x5a0] sm:$0xff]
    %v249 = vld [vmem:[#allocation6 + $0x5a8] sm:$0xff]
    %v250 = vld [vmem:[#allocation6 + $0x5b0] sm:$0xff]
    %v251 = vld [vmem:[#allocation6 + $0x5b8] sm:$0xff]
    %v252 = vld [vmem:[#allocation6 + $0x5c0] sm:$0xff]
    %v253 = vld [vmem:[#allocation6 + $0x5c8] sm:$0xff]
    %v254 = vld [vmem:[#allocation6 + $0x5d0] sm:$0xff]
    %v255 = vld [vmem:[#allocation6 + $0x5d8] sm:$0xff]
    %v256 = vld [vmem:[#allocation6 + $0x5e0] sm:$0xff]
    %v257 = vld [vmem:[#allocation6 + $0x5e8] sm:$0xff]
    %v258 = vld [vmem:[#allocation6 + $0x5f0] sm:$0xff]
    %v259 = vld [vmem:[#allocation6 + $0x5f8] sm:$0xff]
    %v260 = vld [vmem:[#allocation6 + $0x600] sm:$0xff]
    %v261 = vld [vmem:[#allocation6 + $0x608] sm:$0xff]
    %v262 = vld [vmem:[#allocation6 + $0x610] sm:$0xff]
    %v263 = vld [vmem:[#allocation6 + $0x618] sm:$0xff]
    %v264 = vld [vmem:[#allocation6 + $0x620] sm:$0xff]
    %v265 = vld [vmem:[#allocation6 + $0x628] sm:$0xff]
    %v266 = vld [vmem:[#allocation6 + $0x630] sm:$0xff]
    %v267 = vld [vmem:[#allocation6 + $0x638] sm:$0xff]
    %v268 = vld [vmem:[#allocation6 + $0x640] sm:$0xff]
    %v269 = vld [vmem:[#allocation6 + $0x648] sm:$0xff]
    %v270 = vld [vmem:[#allocation6 + $0x650] sm:$0xff]
    %v271 = vld [vmem:[#allocation6 + $0x658] sm:$0xff]
    %v272 = vld [vmem:[#allocation6 + $0x660] sm:$0xff]
    %v273 = vld [vmem:[#allocation6 + $0x668] sm:$0xff]
    %v274 = vld [vmem:[#allocation6 + $0x670] sm:$0xff]
    %v275 = vld [vmem:[#allocation6 + $0x678] sm:$0xff]
    %v276 = vld [vmem:[#allocation6 + $0x680] sm:$0xff]
    %v277 = vld [vmem:[#allocation6 + $0x688] sm:$0xff]
    %v278 = vld [vmem:[#allocation6 + $0x690] sm:$0xff]
    %v279 = vld [vmem:[#allocation6 + $0x698] sm:$0xff]
    %v280 = vld [vmem:[#allocation6 + $0x6a0] sm:$0xff]
    %v281 = vld [vmem:[#allocation6 + $0x6a8] sm:$0xff]
    %v282 = vld [vmem:[#allocation6 + $0x6b0] sm:$0xff]
    %v283 = vld [vmem:[#allocation6 + $0x6b8] sm:$0xff]
    %v284 = vld [vmem:[#allocation6 + $0x6c0] sm:$0xff]
    %v285 = vld [vmem:[#allocation6 + $0x6c8] sm:$0xff]
    %v286 = vld [vmem:[#allocation6 + $0x6d0] sm:$0xff]
    %v287 = vld [vmem:[#allocation6 + $0x6d8] sm:$0xff]
    %v288 = vld [vmem:[#allocation6 + $0x6e0] sm:$0xff]
    %v289 = vld [vmem:[#allocation6 + $0x6e8] sm:$0xff]
    %v290 = vld [vmem:[#allocation6 + $0x6f0] sm:$0xff]
    %v291 = vld [vmem:[#allocation6 + $0x6f8] sm:$0xff]
    %v292 = vld [vmem:[#allocation6 + $0x700] sm:$0xff]
    %v293 = vld [vmem:[#allocation6 + $0x708] sm:$0xff]
    %v294 = vld [vmem:[#allocation6 + $0x710] sm:$0xff]
    %v295 = vld [vmem:[#allocation6 + $0x718] sm:$0xff]
    %v296 = vld [vmem:[#allocation6 + $0x720] sm:$0xff]
    %v297 = vld [vmem:[#allocation6 + $0x728] sm:$0xff]
    %v298 = vld [vmem:[#allocation6 + $0x730] sm:$0xff]
    %v299 = vld [vmem:[#allocation6 + $0x738] sm:$0xff]
    %v300 = vld [vmem:[#allocation6 + $0x740] sm:$0xff]
    %v301 = vld [vmem:[#allocation6 + $0x748] sm:$0xff]
    %v302 = vld [vmem:[#allocation6 + $0x750] sm:$0xff]
    %v303 = vld [vmem:[#allocation6 + $0x758] sm:$0xff]
    %v304 = vld [vmem:[#allocation6 + $0x760] sm:$0xff]
    %v305 = vld [vmem:[#allocation6 + $0x768] sm:$0xff]
    %v306 = vld [vmem:[#allocation6 + $0x770] sm:$0xff]
    %v307 = vld [vmem:[#allocation6 + $0x778] sm:$0xff]
    %v308 = vld [vmem:[#allocation6 + $0x780] sm:$0xff]
    %v309 = vld [vmem:[#allocation6 + $0x788] sm:$0xff]
    %v310 = vld [vmem:[#allocation6 + $0x790] sm:$0xff]
    %v311 = vld [vmem:[#allocation6 + $0x798] sm:$0xff]
    %v312 = vld [vmem:[#allocation6 + $0x7a0] sm:$0xff]
    %v313 = vld [vmem:[#allocation6 + $0x7a8] sm:$0xff]
    %v314 = vld [vmem:[#allocation6 + $0x7b0] sm:$0xff]
    %v315 = vld [vmem:[#allocation6 + $0x7b8] sm:$0xff]
    %v316 = vld [vmem:[#allocation6 + $0x7c0] sm:$0xff]
    %v317 = vld [vmem:[#allocation6 + $0x7c8] sm:$0xff]
    %v318 = vld [vmem:[#allocation6 + $0x7d0] sm:$0xff]
    %v319 = vld [vmem:[#allocation6 + $0x7d8] sm:$0xff]
    %v320 = vld [vmem:[#allocation6 + $0x7e0] sm:$0xff]
    %v321 = vld [vmem:[#allocation6 + $0x7e8] sm:$0xff]
    %v322 = vld [vmem:[#allocation6 + $0x7f0] sm:$0xff]
    %v323 = vld [vmem:[#allocation6 + $0x7f8] sm:$0xff]
    %v324 = vunpack.c.l.bf16 %v68
    %v325 = vunpack.c.h.bf16 %v68
    %v326 = vunpack.c.l.bf16 %v69
    %v327 = vunpack.c.h.bf16 %v69
    %v328 = vunpack.c.l.bf16 %v70
    %v329 = vunpack.c.h.bf16 %v70
    %v330 = vunpack.c.l.bf16 %v71
    %v331 = vunpack.c.h.bf16 %v71
    %v332 = vunpack.c.l.bf16 %v72
    %v333 = vunpack.c.h.bf16 %v72
    %v334 = vunpack.c.l.bf16 %v73
    %v335 = vunpack.c.h.bf16 %v73
    %v336 = vunpack.c.l.bf16 %v74
    %v337 = vunpack.c.h.bf16 %v74
    %v338 = vunpack.c.l.bf16 %v75
    %v339 = vunpack.c.h.bf16 %v75
    %v340 = vunpack.c.l.bf16 %v76
    %v341 = vunpack.c.h.bf16 %v76
    %v342 = vunpack.c.l.bf16 %v77
    %v343 = vunpack.c.h.bf16 %v77
    %v344 = vunpack.c.l.bf16 %v78
    %v345 = vunpack.c.h.bf16 %v78
    %v346 = vunpack.c.l.bf16 %v79
    %v347 = vunpack.c.h.bf16 %v79
    %v348 = vunpack.c.l.bf16 %v80
    %v349 = vunpack.c.h.bf16 %v80
    %v350 = vunpack.c.l.bf16 %v81
    %v351 = vunpack.c.h.bf16 %v81
    %v352 = vunpack.c.l.bf16 %v82
    %v353 = vunpack.c.h.bf16 %v82
    %v354 = vunpack.c.l.bf16 %v83
    %v355 = vunpack.c.h.bf16 %v83
    %v356 = vunpack.c.l.bf16 %v84
    %v357 = vunpack.c.h.bf16 %v84
    %v358 = vunpack.c.l.bf16 %v85
    %v359 = vunpack.c.h.bf16 %v85
    %v360 = vunpack.c.l.bf16 %v86
    %v361 = vunpack.c.h.bf16 %v86
    %v362 = vunpack.c.l.bf16 %v87
    %v363 = vunpack.c.h.bf16 %v87
    %v364 = vunpack.c.l.bf16 %v88
    %v365 = vunpack.c.h.bf16 %v88
    %v366 = vunpack.c.l.bf16 %v89
    %v367 = vunpack.c.h.bf16 %v89
    %v368 = vunpack.c.l.bf16 %v90
    %v369 = vunpack.c.h.bf16 %v90
    %v370 = vunpack.c.l.bf16 %v91
    %v371 = vunpack.c.h.bf16 %v91
    %v372 = vunpack.c.l.bf16 %v92
    %v373 = vunpack.c.h.bf16 %v92
    %v374 = vunpack.c.l.bf16 %v93
    %v375 = vunpack.c.h.bf16 %v93
    %v376 = vunpack.c.l.bf16 %v94
    %v377 = vunpack.c.h.bf16 %v94
    %v378 = vunpack.c.l.bf16 %v95
    %v379 = vunpack.c.h.bf16 %v95
    %v380 = vunpack.c.l.bf16 %v96
    %v381 = vunpack.c.h.bf16 %v96
    %v382 = vunpack.c.l.bf16 %v97
    %v383 = vunpack.c.h.bf16 %v97
    %v384 = vunpack.c.l.bf16 %v98
    %v385 = vunpack.c.h.bf16 %v98
    %v386 = vunpack.c.l.bf16 %v99
    %v387 = vunpack.c.h.bf16 %v99
    %v388 = vunpack.c.l.bf16 %v100
    %v389 = vunpack.c.h.bf16 %v100
    %v390 = vunpack.c.l.bf16 %v101
    %v391 = vunpack.c.h.bf16 %v101
    %v392 = vunpack.c.l.bf16 %v102
    %v393 = vunpack.c.h.bf16 %v102
    %v394 = vunpack.c.l.bf16 %v103
    %v395 = vunpack.c.h.bf16 %v103
    %v396 = vunpack.c.l.bf16 %v104
    %v397 = vunpack.c.h.bf16 %v104
    %v398 = vunpack.c.l.bf16 %v105
    %v399 = vunpack.c.h.bf16 %v105
    %v400 = vunpack.c.l.bf16 %v106
    %v401 = vunpack.c.h.bf16 %v106
    %v402 = vunpack.c.l.bf16 %v107
    %v403 = vunpack.c.h.bf16 %v107
    %v404 = vunpack.c.l.bf16 %v108
    %v405 = vunpack.c.h.bf16 %v108
    %v406 = vunpack.c.l.bf16 %v109
    %v407 = vunpack.c.h.bf16 %v109
    %v408 = vunpack.c.l.bf16 %v110
    %v409 = vunpack.c.h.bf16 %v110
    %v410 = vunpack.c.l.bf16 %v111
    %v411 = vunpack.c.h.bf16 %v111
    %v412 = vunpack.c.l.bf16 %v112
    %v413 = vunpack.c.h.bf16 %v112
    %v414 = vunpack.c.l.bf16 %v113
    %v415 = vunpack.c.h.bf16 %v113
    %v416 = vunpack.c.l.bf16 %v114
    %v417 = vunpack.c.h.bf16 %v114
    %v418 = vunpack.c.l.bf16 %v115
    %v419 = vunpack.c.h.bf16 %v115
    %v420 = vunpack.c.l.bf16 %v116
    %v421 = vunpack.c.h.bf16 %v116
    %v422 = vunpack.c.l.bf16 %v117
    %v423 = vunpack.c.h.bf16 %v117
    %v424 = vunpack.c.l.bf16 %v118
    %v425 = vunpack.c.h.bf16 %v118
    %v426 = vunpack.c.l.bf16 %v119
    %v427 = vunpack.c.h.bf16 %v119
    %v428 = vunpack.c.l.bf16 %v120
    %v429 = vunpack.c.h.bf16 %v120
    %v430 = vunpack.c.l.bf16 %v121
    %v431 = vunpack.c.h.bf16 %v121
    %v432 = vunpack.c.l.bf16 %v122
    %v433 = vunpack.c.h.bf16 %v122
    %v434 = vunpack.c.l.bf16 %v123
    %v435 = vunpack.c.h.bf16 %v123
    %v436 = vunpack.c.l.bf16 %v124
    %v437 = vunpack.c.h.bf16 %v124
    %v438 = vunpack.c.l.bf16 %v125
    %v439 = vunpack.c.h.bf16 %v125
    %v440 = vunpack.c.l.bf16 %v126
    %v441 = vunpack.c.h.bf16 %v126
    %v442 = vunpack.c.l.bf16 %v127
    %v443 = vunpack.c.h.bf16 %v127
    %v444 = vunpack.c.l.bf16 %v128
    %v445 = vunpack.c.h.bf16 %v128
    %v446 = vunpack.c.l.bf16 %v129
    %v447 = vunpack.c.h.bf16 %v129
    %v448 = vunpack.c.l.bf16 %v130
    %v449 = vunpack.c.h.bf16 %v130
    %v450 = vunpack.c.l.bf16 %v131
    %v451 = vunpack.c.h.bf16 %v131
    %v452 = vunpack.c.l.bf16 %v132
    %v453 = vunpack.c.h.bf16 %v132
    %v454 = vunpack.c.l.bf16 %v133
    %v455 = vunpack.c.h.bf16 %v133
    %v456 = vunpack.c.l.bf16 %v134
    %v457 = vunpack.c.h.bf16 %v134
    %v458 = vunpack.c.l.bf16 %v135
    %v459 = vunpack.c.h.bf16 %v135
    %v460 = vunpack.c.l.bf16 %v136
    %v461 = vunpack.c.h.bf16 %v136
    %v462 = vunpack.c.l.bf16 %v137
    %v463 = vunpack.c.h.bf16 %v137
    %v464 = vunpack.c.l.bf16 %v138
    %v465 = vunpack.c.h.bf16 %v138
    %v466 = vunpack.c.l.bf16 %v139
    %v467 = vunpack.c.h.bf16 %v139
    %v468 = vunpack.c.l.bf16 %v140
    %v469 = vunpack.c.h.bf16 %v140
    %v470 = vunpack.c.l.bf16 %v141
    %v471 = vunpack.c.h.bf16 %v141
    %v472 = vunpack.c.l.bf16 %v142
    %v473 = vunpack.c.h.bf16 %v142
    %v474 = vunpack.c.l.bf16 %v143
    %v475 = vunpack.c.h.bf16 %v143
    %v476 = vunpack.c.l.bf16 %v144
    %v477 = vunpack.c.h.bf16 %v144
    %v478 = vunpack.c.l.bf16 %v145
    %v479 = vunpack.c.h.bf16 %v145
    %v480 = vunpack.c.l.bf16 %v146
    %v481 = vunpack.c.h.bf16 %v146
    %v482 = vunpack.c.l.bf16 %v147
    %v483 = vunpack.c.h.bf16 %v147
    %v484 = vunpack.c.l.bf16 %v148
    %v485 = vunpack.c.h.bf16 %v148
    %v486 = vunpack.c.l.bf16 %v149
    %v487 = vunpack.c.h.bf16 %v149
    %v488 = vunpack.c.l.bf16 %v150
    %v489 = vunpack.c.h.bf16 %v150
    %v490 = vunpack.c.l.bf16 %v151
    %v491 = vunpack.c.h.bf16 %v151
    %v492 = vunpack.c.l.bf16 %v152
    %v493 = vunpack.c.h.bf16 %v152
    %v494 = vunpack.c.l.bf16 %v153
    %v495 = vunpack.c.h.bf16 %v153
    %v496 = vunpack.c.l.bf16 %v154
    %v497 = vunpack.c.h.bf16 %v154
    %v498 = vunpack.c.l.bf16 %v155
    %v499 = vunpack.c.h.bf16 %v155
    %v500 = vunpack.c.l.bf16 %v156
    %v501 = vunpack.c.h.bf16 %v156
    %v502 = vunpack.c.l.bf16 %v157
    %v503 = vunpack.c.h.bf16 %v157
    %v504 = vunpack.c.l.bf16 %v158
    %v505 = vunpack.c.h.bf16 %v158
    %v506 = vunpack.c.l.bf16 %v159
    %v507 = vunpack.c.h.bf16 %v159
    %v508 = vunpack.c.l.bf16 %v160
    %v509 = vunpack.c.h.bf16 %v160
    %v510 = vunpack.c.l.bf16 %v161
    %v511 = vunpack.c.h.bf16 %v161
    %v512 = vunpack.c.l.bf16 %v162
    %v513 = vunpack.c.h.bf16 %v162
    %v514 = vunpack.c.l.bf16 %v163
    %v515 = vunpack.c.h.bf16 %v163
    %v516 = vunpack.c.l.bf16 %v164
    %v517 = vunpack.c.h.bf16 %v164
    %v518 = vunpack.c.l.bf16 %v165
    %v519 = vunpack.c.h.bf16 %v165
    %v520 = vunpack.c.l.bf16 %v166
    %v521 = vunpack.c.h.bf16 %v166
    %v522 = vunpack.c.l.bf16 %v167
    %v523 = vunpack.c.h.bf16 %v167
    %v524 = vunpack.c.l.bf16 %v168
    %v525 = vunpack.c.h.bf16 %v168
    %v526 = vunpack.c.l.bf16 %v169
    %v527 = vunpack.c.h.bf16 %v169
    %v528 = vunpack.c.l.bf16 %v170
    %v529 = vunpack.c.h.bf16 %v170
    %v530 = vunpack.c.l.bf16 %v171
    %v531 = vunpack.c.h.bf16 %v171
    %v532 = vunpack.c.l.bf16 %v172
    %v533 = vunpack.c.h.bf16 %v172
    %v534 = vunpack.c.l.bf16 %v173
    %v535 = vunpack.c.h.bf16 %v173
    %v536 = vunpack.c.l.bf16 %v174
    %v537 = vunpack.c.h.bf16 %v174
    %v538 = vunpack.c.l.bf16 %v175
    %v539 = vunpack.c.h.bf16 %v175
    %v540 = vunpack.c.l.bf16 %v176
    %v541 = vunpack.c.h.bf16 %v176
    %v542 = vunpack.c.l.bf16 %v177
    %v543 = vunpack.c.h.bf16 %v177
    %v544 = vunpack.c.l.bf16 %v178
    %v545 = vunpack.c.h.bf16 %v178
    %v546 = vunpack.c.l.bf16 %v179
    %v547 = vunpack.c.h.bf16 %v179
    %v548 = vunpack.c.l.bf16 %v180
    %v549 = vunpack.c.h.bf16 %v180
    %v550 = vunpack.c.l.bf16 %v181
    %v551 = vunpack.c.h.bf16 %v181
    %v552 = vunpack.c.l.bf16 %v182
    %v553 = vunpack.c.h.bf16 %v182
    %v554 = vunpack.c.l.bf16 %v183
    %v555 = vunpack.c.h.bf16 %v183
    %v556 = vunpack.c.l.bf16 %v184
    %v557 = vunpack.c.h.bf16 %v184
    %v558 = vunpack.c.l.bf16 %v185
    %v559 = vunpack.c.h.bf16 %v185
    %v560 = vunpack.c.l.bf16 %v186
    %v561 = vunpack.c.h.bf16 %v186
    %v562 = vunpack.c.l.bf16 %v187
    %v563 = vunpack.c.h.bf16 %v187
    %v564 = vunpack.c.l.bf16 %v188
    %v565 = vunpack.c.h.bf16 %v188
    %v566 = vunpack.c.l.bf16 %v189
    %v567 = vunpack.c.h.bf16 %v189
    %v568 = vunpack.c.l.bf16 %v190
    %v569 = vunpack.c.h.bf16 %v190
    %v570 = vunpack.c.l.bf16 %v191
    %v571 = vunpack.c.h.bf16 %v191
    %v572 = vunpack.c.l.bf16 %v192
    %v573 = vunpack.c.h.bf16 %v192
    %v574 = vunpack.c.l.bf16 %v193
    %v575 = vunpack.c.h.bf16 %v193
    %v576 = vunpack.c.l.bf16 %v194
    %v577 = vunpack.c.h.bf16 %v194
    %v578 = vunpack.c.l.bf16 %v195
    %v579 = vunpack.c.h.bf16 %v195
    %v580 = vunpack.c.l.bf16 %v196
    %v581 = vunpack.c.h.bf16 %v196
    %v582 = vunpack.c.l.bf16 %v197
    %v583 = vunpack.c.h.bf16 %v197
    %v584 = vunpack.c.l.bf16 %v198
    %v585 = vunpack.c.h.bf16 %v198
    %v586 = vunpack.c.l.bf16 %v199
    %v587 = vunpack.c.h.bf16 %v199
    %v588 = vunpack.c.l.bf16 %v200
    %v589 = vunpack.c.h.bf16 %v200
    %v590 = vunpack.c.l.bf16 %v201
    %v591 = vunpack.c.h.bf16 %v201
    %v592 = vunpack.c.l.bf16 %v202
    %v593 = vunpack.c.h.bf16 %v202
    %v594 = vunpack.c.l.bf16 %v203
    %v595 = vunpack.c.h.bf16 %v203
    %v596 = vunpack.c.l.bf16 %v204
    %v597 = vunpack.c.h.bf16 %v204
    %v598 = vunpack.c.l.bf16 %v205
    %v599 = vunpack.c.h.bf16 %v205
    %v600 = vunpack.c.l.bf16 %v206
    %v601 = vunpack.c.h.bf16 %v206
    %v602 = vunpack.c.l.bf16 %v207
    %v603 = vunpack.c.h.bf16 %v207
    %v604 = vunpack.c.l.bf16 %v208
    %v605 = vunpack.c.h.bf16 %v208
    %v606 = vunpack.c.l.bf16 %v209
    %v607 = vunpack.c.h.bf16 %v209
    %v608 = vunpack.c.l.bf16 %v210
    %v609 = vunpack.c.h.bf16 %v210
    %v610 = vunpack.c.l.bf16 %v211
    %v611 = vunpack.c.h.bf16 %v211
    %v612 = vunpack.c.l.bf16 %v212
    %v613 = vunpack.c.h.bf16 %v212
    %v614 = vunpack.c.l.bf16 %v213
    %v615 = vunpack.c.h.bf16 %v213
    %v616 = vunpack.c.l.bf16 %v214
    %v617 = vunpack.c.h.bf16 %v214
    %v618 = vunpack.c.l.bf16 %v215
    %v619 = vunpack.c.h.bf16 %v215
    %v620 = vunpack.c.l.bf16 %v216
    %v621 = vunpack.c.h.bf16 %v216
    %v622 = vunpack.c.l.bf16 %v217
    %v623 = vunpack.c.h.bf16 %v217
    %v624 = vunpack.c.l.bf16 %v218
    %v625 = vunpack.c.h.bf16 %v218
    %v626 = vunpack.c.l.bf16 %v219
    %v627 = vunpack.c.h.bf16 %v219
    %v628 = vunpack.c.l.bf16 %v220
    %v629 = vunpack.c.h.bf16 %v220
    %v630 = vunpack.c.l.bf16 %v221
    %v631 = vunpack.c.h.bf16 %v221
    %v632 = vunpack.c.l.bf16 %v222
    %v633 = vunpack.c.h.bf16 %v222
    %v634 = vunpack.c.l.bf16 %v223
    %v635 = vunpack.c.h.bf16 %v223
    %v636 = vunpack.c.l.bf16 %v224
    %v637 = vunpack.c.h.bf16 %v224
    %v638 = vunpack.c.l.bf16 %v225
    %v639 = vunpack.c.h.bf16 %v225
    %v640 = vunpack.c.l.bf16 %v226
    %v641 = vunpack.c.h.bf16 %v226
    %v642 = vunpack.c.l.bf16 %v227
    %v643 = vunpack.c.h.bf16 %v227
    %v644 = vunpack.c.l.bf16 %v228
    %v645 = vunpack.c.h.bf16 %v228
    %v646 = vunpack.c.l.bf16 %v229
    %v647 = vunpack.c.h.bf16 %v229
    %v648 = vunpack.c.l.bf16 %v230
    %v649 = vunpack.c.h.bf16 %v230
    %v650 = vunpack.c.l.bf16 %v231
    %v651 = vunpack.c.h.bf16 %v231
    %v652 = vunpack.c.l.bf16 %v232
    %v653 = vunpack.c.h.bf16 %v232
    %v654 = vunpack.c.l.bf16 %v233
    %v655 = vunpack.c.h.bf16 %v233
    %v656 = vunpack.c.l.bf16 %v234
    %v657 = vunpack.c.h.bf16 %v234
    %v658 = vunpack.c.l.bf16 %v235
    %v659 = vunpack.c.h.bf16 %v235
    %v660 = vunpack.c.l.bf16 %v236
    %v661 = vunpack.c.h.bf16 %v236
    %v662 = vunpack.c.l.bf16 %v237
    %v663 = vunpack.c.h.bf16 %v237
    %v664 = vunpack.c.l.bf16 %v238
    %v665 = vunpack.c.h.bf16 %v238
    %v666 = vunpack.c.l.bf16 %v239
    %v667 = vunpack.c.h.bf16 %v239
    %v668 = vunpack.c.l.bf16 %v240
    %v669 = vunpack.c.h.bf16 %v240
    %v670 = vunpack.c.l.bf16 %v241
    %v671 = vunpack.c.h.bf16 %v241
    %v672 = vunpack.c.l.bf16 %v242
    %v673 = vunpack.c.h.bf16 %v242
    %v674 = vunpack.c.l.bf16 %v243
    %v675 = vunpack.c.h.bf16 %v243
    %v676 = vunpack.c.l.bf16 %v244
    %v677 = vunpack.c.h.bf16 %v244
    %v678 = vunpack.c.l.bf16 %v245
    %v679 = vunpack.c.h.bf16 %v245
    %v680 = vunpack.c.l.bf16 %v246
    %v681 = vunpack.c.h.bf16 %v246
    %v682 = vunpack.c.l.bf16 %v247
    %v683 = vunpack.c.h.bf16 %v247
    %v684 = vunpack.c.l.bf16 %v248
    %v685 = vunpack.c.h.bf16 %v248
    %v686 = vunpack.c.l.bf16 %v249
    %v687 = vunpack.c.h.bf16 %v249
    %v688 = vunpack.c.l.bf16 %v250
    %v689 = vunpack.c.h.bf16 %v250
    %v690 = vunpack.c.l.bf16 %v251
    %v691 = vunpack.c.h.bf16 %v251
    %v692 = vunpack.c.l.bf16 %v252
    %v693 = vunpack.c.h.bf16 %v252
    %v694 = vunpack.c.l.bf16 %v253
    %v695 = vunpack.c.h.bf16 %v253
    %v696 = vunpack.c.l.bf16 %v254
    %v697 = vunpack.c.h.bf16 %v254
    %v698 = vunpack.c.l.bf16 %v255
    %v699 = vunpack.c.h.bf16 %v255
    %v700 = vunpack.c.l.bf16 %v256
    %v701 = vunpack.c.h.bf16 %v256
    %v702 = vunpack.c.l.bf16 %v257
    %v703 = vunpack.c.h.bf16 %v257
    %v704 = vunpack.c.l.bf16 %v258
    %v705 = vunpack.c.h.bf16 %v258
    %v706 = vunpack.c.l.bf16 %v259
    %v707 = vunpack.c.h.bf16 %v259
    %v708 = vunpack.c.l.bf16 %v260
    %v709 = vunpack.c.h.bf16 %v260
    %v710 = vunpack.c.l.bf16 %v261
    %v711 = vunpack.c.h.bf16 %v261
    %v712 = vunpack.c.l.bf16 %v262
    %v713 = vunpack.c.h.bf16 %v262
    %v714 = vunpack.c.l.bf16 %v263
    %v715 = vunpack.c.h.bf16 %v263
    %v716 = vunpack.c.l.bf16 %v264
    %v717 = vunpack.c.h.bf16 %v264
    %v718 = vunpack.c.l.bf16 %v265
    %v719 = vunpack.c.h.bf16 %v265
    %v720 = vunpack.c.l.bf16 %v266
    %v721 = vunpack.c.h.bf16 %v266
    %v722 = vunpack.c.l.bf16 %v267
    %v723 = vunpack.c.h.bf16 %v267
    %v724 = vunpack.c.l.bf16 %v268
    %v725 = vunpack.c.h.bf16 %v268
    %v726 = vunpack.c.l.bf16 %v269
    %v727 = vunpack.c.h.bf16 %v269
    %v728 = vunpack.c.l.bf16 %v270
    %v729 = vunpack.c.h.bf16 %v270
    %v730 = vunpack.c.l.bf16 %v271
    %v731 = vunpack.c.h.bf16 %v271
    %v732 = vunpack.c.l.bf16 %v272
    %v733 = vunpack.c.h.bf16 %v272
    %v734 = vunpack.c.l.bf16 %v273
    %v735 = vunpack.c.h.bf16 %v273
    %v736 = vunpack.c.l.bf16 %v274
    %v737 = vunpack.c.h.bf16 %v274
    %v738 = vunpack.c.l.bf16 %v275
    %v739 = vunpack.c.h.bf16 %v275
    %v740 = vunpack.c.l.bf16 %v276
    %v741 = vunpack.c.h.bf16 %v276
    %v742 = vunpack.c.l.bf16 %v277
    %v743 = vunpack.c.h.bf16 %v277
    %v744 = vunpack.c.l.bf16 %v278
    %v745 = vunpack.c.h.bf16 %v278
    %v746 = vunpack.c.l.bf16 %v279
    %v747 = vunpack.c.h.bf16 %v279
    %v748 = vunpack.c.l.bf16 %v280
    %v749 = vunpack.c.h.bf16 %v280
    %v750 = vunpack.c.l.bf16 %v281
    %v751 = vunpack.c.h.bf16 %v281
    %v752 = vunpack.c.l.bf16 %v282
    %v753 = vunpack.c.h.bf16 %v282
    %v754 = vunpack.c.l.bf16 %v283
    %v755 = vunpack.c.h.bf16 %v283
    %v756 = vunpack.c.l.bf16 %v284
    %v757 = vunpack.c.h.bf16 %v284
    %v758 = vunpack.c.l.bf16 %v285
    %v759 = vunpack.c.h.bf16 %v285
    %v760 = vunpack.c.l.bf16 %v286
    %v761 = vunpack.c.h.bf16 %v286
    %v762 = vunpack.c.l.bf16 %v287
    %v763 = vunpack.c.h.bf16 %v287
    %v764 = vunpack.c.l.bf16 %v288
    %v765 = vunpack.c.h.bf16 %v288
    %v766 = vunpack.c.l.bf16 %v289
    %v767 = vunpack.c.h.bf16 %v289
    %v768 = vunpack.c.l.bf16 %v290
    %v769 = vunpack.c.h.bf16 %v290
    %v770 = vunpack.c.l.bf16 %v291
    %v771 = vunpack.c.h.bf16 %v291
    %v772 = vunpack.c.l.bf16 %v292
    %v773 = vunpack.c.h.bf16 %v292
    %v774 = vunpack.c.l.bf16 %v293
    %v775 = vunpack.c.h.bf16 %v293
    %v776 = vunpack.c.l.bf16 %v294
    %v777 = vunpack.c.h.bf16 %v294
    %v778 = vunpack.c.l.bf16 %v295
    %v779 = vunpack.c.h.bf16 %v295
    %v780 = vunpack.c.l.bf16 %v296
    %v781 = vunpack.c.h.bf16 %v296
    %v782 = vunpack.c.l.bf16 %v297
    %v783 = vunpack.c.h.bf16 %v297
    %v784 = vunpack.c.l.bf16 %v298
    %v785 = vunpack.c.h.bf16 %v298
    %v786 = vunpack.c.l.bf16 %v299
    %v787 = vunpack.c.h.bf16 %v299
    %v788 = vunpack.c.l.bf16 %v300
    %v789 = vunpack.c.h.bf16 %v300
    %v790 = vunpack.c.l.bf16 %v301
    %v791 = vunpack.c.h.bf16 %v301
    %v792 = vunpack.c.l.bf16 %v302
    %v793 = vunpack.c.h.bf16 %v302
    %v794 = vunpack.c.l.bf16 %v303
    %v795 = vunpack.c.h.bf16 %v303
    %v796 = vunpack.c.l.bf16 %v304
    %v797 = vunpack.c.h.bf16 %v304
    %v798 = vunpack.c.l.bf16 %v305
    %v799 = vunpack.c.h.bf16 %v305
    %v800 = vunpack.c.l.bf16 %v306
    %v801 = vunpack.c.h.bf16 %v306
    %v802 = vunpack.c.l.bf16 %v307
    %v803 = vunpack.c.h.bf16 %v307
    %v804 = vunpack.c.l.bf16 %v308
    %v805 = vunpack.c.h.bf16 %v308
    %v806 = vunpack.c.l.bf16 %v309
    %v807 = vunpack.c.h.bf16 %v309
    %v808 = vunpack.c.l.bf16 %v310
    %v809 = vunpack.c.h.bf16 %v310
    %v810 = vunpack.c.l.bf16 %v311
    %v811 = vunpack.c.h.bf16 %v311
    %v812 = vunpack.c.l.bf16 %v312
    %v813 = vunpack.c.h.bf16 %v312
    %v814 = vunpack.c.l.bf16 %v313
    %v815 = vunpack.c.h.bf16 %v313
    %v816 = vunpack.c.l.bf16 %v314
    %v817 = vunpack.c.h.bf16 %v314
    %v818 = vunpack.c.l.bf16 %v315
    %v819 = vunpack.c.h.bf16 %v315
    %v820 = vunpack.c.l.bf16 %v316
    %v821 = vunpack.c.h.bf16 %v316
    %v822 = vunpack.c.l.bf16 %v317
    %v823 = vunpack.c.h.bf16 %v317
    %v824 = vunpack.c.l.bf16 %v318
    %v825 = vunpack.c.h.bf16 %v318
    %v826 = vunpack.c.l.bf16 %v319
    %v827 = vunpack.c.h.bf16 %v319
    %v828 = vunpack.c.l.bf16 %v320
    %v829 = vunpack.c.h.bf16 %v320
    %v830 = vunpack.c.l.bf16 %v321
    %v831 = vunpack.c.h.bf16 %v321
    %v832 = vunpack.c.l.bf16 %v322
    %v833 = vunpack.c.h.bf16 %v322
    %v834 = vunpack.c.l.bf16 %v323
    %v835 = vunpack.c.h.bf16 %v323
    %v836 = vld [vmem:[%s2] sm:$0xf]
    %v838 = vlaneseq
    %v839 = vshrl.u32 %v838, 7
    %v840 = vsub.s32 0, %v839
    %v841 = vrot.slane %v67, %v840
    %v842 = vlaneseq
    %v843 = vshrl.u32 %v842, 7
    %v844 = vsub.s32 1, %v843
    %v845 = vrot.slane %v67, %v844
    %v846 = vlaneseq
    %v847 = vshrl.u32 %v846, 7
    %v848 = vsub.s32 2, %v847
    %v849 = vrot.slane %v67, %v848
    %v850 = vlaneseq
    %v851 = vshrl.u32 %v850, 7
    %v852 = vsub.s32 3, %v851
    %v853 = vrot.slane %v67, %v852
    %v854 = vlaneseq
    %v855 = vshrl.u32 %v854, 7
    %v856 = vsub.s32 4, %v855
    %v857 = vrot.slane %v67, %v856
    %v858 = vlaneseq
    %v859 = vshrl.u32 %v858, 7
    %v860 = vsub.s32 5, %v859
    %v861 = vrot.slane %v67, %v860
    %v862 = vlaneseq
    %v863 = vshrl.u32 %v862, 7
    %v864 = vsub.s32 6, %v863
    %v865 = vrot.slane %v67, %v864
    %v866 = vlaneseq
    %v867 = vshrl.u32 %v866, 7
    %v868 = vsub.s32 7, %v867
    %v869 = vrot.slane %v67, %v868
    %v879 = vlaneseq
    %v880 = vshrl.u32 %v879, 7
    %v881 = vsub.s32 0, %v880
    %v882 = vrot.slane %v836, %v881
    %v883 = vlaneseq
    %v884 = vshrl.u32 %v883, 7
    %v885 = vsub.s32 1, %v884
    %v886 = vrot.slane %v836, %v885
    %v887 = vlaneseq
    %v888 = vshrl.u32 %v887, 7
    %v889 = vsub.s32 2, %v888
    %v890 = vrot.slane %v836, %v889
    %v891 = vlaneseq
    %v892 = vshrl.u32 %v891, 7
    %v893 = vsub.s32 3, %v892
    %v894 = vrot.slane %v836, %v893
    %899 = vmatprep.subr.mxu0 %v385
    %900 = vmatpush1.msra.mxu0 %v384
    %901 = vmatprep.subr.mxu0 %v381
    %902 = vmatpush1.msra.mxu0 %v380
    %903 = vmatprep.subr.mxu0 %v377
    %904 = vmatpush1.msra.mxu0 %v376
    %905 = vmatprep.subr.mxu0 %v373
    %906 = vmatpush1.msra.mxu0 %v372
    %907 = vmatprep.subr.mxu0 %v369
    %908 = vmatpush1.msra.mxu0 %v368
    %909 = vmatprep.subr.mxu0 %v365
    %910 = vmatpush1.msra.mxu0 %v364
    %911 = vmatprep.subr.mxu0 %v361
    %912 = vmatpush1.msra.mxu0 %v360
    %913 = vmatprep.subr.mxu0 %v357
    %914 = vmatpush1.msra.mxu0 %v356
    %915 = vmatprep.subr.mxu0 %v353
    %916 = vmatpush1.msra.mxu0 %v352
    %917 = vmatprep.subr.mxu0 %v349
    %918 = vmatpush1.msra.mxu0 %v348
    %919 = vmatprep.subr.mxu0 %v345
    %920 = vmatpush1.msra.mxu0 %v344
    %921 = vmatprep.subr.mxu0 %v341
    %922 = vmatpush1.msra.mxu0 %v340
    %923 = vmatprep.subr.mxu0 %v337
    %924 = vmatpush1.msra.mxu0 %v336
    %925 = vmatprep.subr.mxu0 %v333
    %926 = vmatpush1.msra.mxu0 %v332
    %927 = vmatprep.subr.mxu0 %v329
    %928 = vmatpush1.msra.mxu0 %v328
    %929 = vmatprep.subr.mxu0 %v325
    %930 = vmatpush1.msra.mxu0 %v324
    %931 = vmatprep.subr.mxu0 %v449
    %932 = vmatpush2.msra.mxu0 %v448
    %933 = vmatprep.subr.mxu0 %v445
    %934 = vmatpush2.msra.mxu0 %v444
    %935 = vmatprep.subr.mxu0 %v441
    %936 = vmatpush2.msra.mxu0 %v440
    %937 = vmatprep.subr.mxu0 %v437
    %938 = vmatpush2.msra.mxu0 %v436
    %939 = vmatprep.subr.mxu0 %v433
    %940 = vmatpush2.msra.mxu0 %v432
    %941 = vmatprep.subr.mxu0 %v429
    %942 = vmatpush2.msra.mxu0 %v428
    %943 = vmatprep.subr.mxu0 %v425
    %944 = vmatpush2.msra.mxu0 %v424
    %945 = vmatprep.subr.mxu0 %v421
    %946 = vmatpush2.msra.mxu0 %v420
    %947 = vmatprep.subr.mxu0 %v417
    %948 = vmatpush2.msra.mxu0 %v416
    %949 = vmatprep.subr.mxu0 %v413
    %950 = vmatpush2.msra.mxu0 %v412
    %951 = vmatprep.subr.mxu0 %v409
    %952 = vmatpush2.msra.mxu0 %v408
    %953 = vmatprep.subr.mxu0 %v405
    %954 = vmatpush2.msra.mxu0 %v404
    %955 = vmatprep.subr.mxu0 %v401
    %956 = vmatpush2.msra.mxu0 %v400
    %957 = vmatprep.subr.mxu0 %v397
    %958 = vmatpush2.msra.mxu0 %v396
    %959 = vmatprep.subr.mxu0 %v393
    %960 = vmatpush2.msra.mxu0 %v392
    %961 = vmatprep.subr.mxu0 %v389
    %962 = vmatpush2.msra.mxu0 %v388
    %963 = vmatprep.mubr.f32.mxu0 %v845
    %964 = vmatmul.mubr.f32.gmra.mxu0 %v841
    %v965 = vpop.f32.mrf.mxu0
    %v966 = vadd.f32 %v882, %v965
    %v967 = vpop.f32.mrf.mxu0
    %v968 = vadd.f32 %v886, %v967
    %969 = vdwg.mxu0
    %970 = vmatprep.subr.mxu0 %v513
    %971 = vmatpush1.msra.mxu0 %v512
    %972 = vmatprep.subr.mxu0 %v509
    %973 = vmatpush1.msra.mxu0 %v508
    %974 = vmatprep.subr.mxu0 %v505
    %975 = vmatpush1.msra.mxu0 %v504
    %976 = vmatprep.subr.mxu0 %v501
    %977 = vmatpush1.msra.mxu0 %v500
    %978 = vmatprep.subr.mxu0 %v497
    %979 = vmatpush1.msra.mxu0 %v496
    %980 = vmatprep.subr.mxu0 %v493
    %981 = vmatpush1.msra.mxu0 %v492
    %982 = vmatprep.subr.mxu0 %v489
    %983 = vmatpush1.msra.mxu0 %v488
    %984 = vmatprep.subr.mxu0 %v485
    %985 = vmatpush1.msra.mxu0 %v484
    %986 = vmatprep.subr.mxu0 %v481
    %987 = vmatpush1.msra.mxu0 %v480
    %988 = vmatprep.subr.mxu0 %v477
    %989 = vmatpush1.msra.mxu0 %v476
    %990 = vmatprep.subr.mxu0 %v473
    %991 = vmatpush1.msra.mxu0 %v472
    %992 = vmatprep.subr.mxu0 %v469
    %993 = vmatpush1.msra.mxu0 %v468
    %994 = vmatprep.subr.mxu0 %v465
    %995 = vmatpush1.msra.mxu0 %v464
    %996 = vmatprep.subr.mxu0 %v461
    %997 = vmatpush1.msra.mxu0 %v460
    %998 = vmatprep.subr.mxu0 %v457
    %999 = vmatpush1.msra.mxu0 %v456
    %1000 = vmatprep.subr.mxu0 %v453
    %1001 = vmatpush1.msra.mxu0 %v452
    %1002 = vmatprep.subr.mxu0 %v577
    %1003 = vmatpush2.msra.mxu0 %v576
    %1004 = vmatprep.subr.mxu0 %v573
    %1005 = vmatpush2.msra.mxu0 %v572
    %1006 = vmatprep.subr.mxu0 %v569
    %1007 = vmatpush2.msra.mxu0 %v568
    %1008 = vmatprep.subr.mxu0 %v565
    %1009 = vmatpush2.msra.mxu0 %v564
    %1010 = vmatprep.subr.mxu0 %v561
    %1011 = vmatpush2.msra.mxu0 %v560
    %1012 = vmatprep.subr.mxu0 %v557
    %1013 = vmatpush2.msra.mxu0 %v556
    %1014 = vmatprep.subr.mxu0 %v553
    %1015 = vmatpush2.msra.mxu0 %v552
    %1016 = vmatprep.subr.mxu0 %v549
    %1017 = vmatpush2.msra.mxu0 %v548
    %1018 = vmatprep.subr.mxu0 %v545
    %1019 = vmatpush2.msra.mxu0 %v544
    %1020 = vmatprep.subr.mxu0 %v541
    %1021 = vmatpush2.msra.mxu0 %v540
    %1022 = vmatprep.subr.mxu0 %v537
    %1023 = vmatpush2.msra.mxu0 %v536
    %1024 = vmatprep.subr.mxu0 %v533
    %1025 = vmatpush2.msra.mxu0 %v532
    %1026 = vmatprep.subr.mxu0 %v529
    %1027 = vmatpush2.msra.mxu0 %v528
    %1028 = vmatprep.subr.mxu0 %v525
    %1029 = vmatpush2.msra.mxu0 %v524
    %1030 = vmatprep.subr.mxu0 %v521
    %1031 = vmatpush2.msra.mxu0 %v520
    %1032 = vmatprep.subr.mxu0 %v517
    %1033 = vmatpush2.msra.mxu0 %v516
    %1034 = vmatprep.mubr.f32.mxu0 %v853
    %1035 = vmatmul.mubr.f32.gmra.mxu0 %v849
    %v1036 = vpop.f32.mrf.mxu0
    %v1037 = vadd.f32 %v966, %v1036
    %v1038 = vpop.f32.mrf.mxu0
    %v1039 = vadd.f32 %v968, %v1038
    %1040 = vdwg.mxu0
    %1041 = vmatprep.subr.mxu0 %v641
    %1042 = vmatpush1.msra.mxu0 %v640
    %1043 = vmatprep.subr.mxu0 %v637
    %1044 = vmatpush1.msra.mxu0 %v636
    %1045 = vmatprep.subr.mxu0 %v633
    %1046 = vmatpush1.msra.mxu0 %v632
    %1047 = vmatprep.subr.mxu0 %v629
    %1048 = vmatpush1.msra.mxu0 %v628
    %1049 = vmatprep.subr.mxu0 %v625
    %1050 = vmatpush1.msra.mxu0 %v624
    %1051 = vmatprep.subr.mxu0 %v621
    %1052 = vmatpush1.msra.mxu0 %v620
    %1053 = vmatprep.subr.mxu0 %v617
    %1054 = vmatpush1.msra.mxu0 %v616
    %1055 = vmatprep.subr.mxu0 %v613
    %1056 = vmatpush1.msra.mxu0 %v612
    %1057 = vmatprep.subr.mxu0 %v609
    %1058 = vmatpush1.msra.mxu0 %v608
    %1059 = vmatprep.subr.mxu0 %v605
    %1060 = vmatpush1.msra.mxu0 %v604
    %1061 = vmatprep.subr.mxu0 %v601
    %1062 = vmatpush1.msra.mxu0 %v600
    %1063 = vmatprep.subr.mxu0 %v597
    %1064 = vmatpush1.msra.mxu0 %v596
    %1065 = vmatprep.subr.mxu0 %v593
    %1066 = vmatpush1.msra.mxu0 %v592
    %1067 = vmatprep.subr.mxu0 %v589
    %1068 = vmatpush1.msra.mxu0 %v588
    %1069 = vmatprep.subr.mxu0 %v585
    %1070 = vmatpush1.msra.mxu0 %v584
    %1071 = vmatprep.subr.mxu0 %v581
    %1072 = vmatpush1.msra.mxu0 %v580
    %1073 = vmatprep.subr.mxu0 %v705
    %1074 = vmatpush2.msra.mxu0 %v704
    %1075 = vmatprep.subr.mxu0 %v701
    %1076 = vmatpush2.msra.mxu0 %v700
    %1077 = vmatprep.subr.mxu0 %v697
    %1078 = vmatpush2.msra.mxu0 %v696
    %1079 = vmatprep.subr.mxu0 %v693
    %1080 = vmatpush2.msra.mxu0 %v692
    %1081 = vmatprep.subr.mxu0 %v689
    %1082 = vmatpush2.msra.mxu0 %v688
    %1083 = vmatprep.subr.mxu0 %v685
    %1084 = vmatpush2.msra.mxu0 %v684
    %1085 = vmatprep.subr.mxu0 %v681
    %1086 = vmatpush2.msra.mxu0 %v680
    %1087 = vmatprep.subr.mxu0 %v677
    %1088 = vmatpush2.msra.mxu0 %v676
    %1089 = vmatprep.subr.mxu0 %v673
    %1090 = vmatpush2.msra.mxu0 %v672
    %1091 = vmatprep.subr.mxu0 %v669
    %1092 = vmatpush2.msra.mxu0 %v668
    %1093 = vmatprep.subr.mxu0 %v665
    %1094 = vmatpush2.msra.mxu0 %v664
    %1095 = vmatprep.subr.mxu0 %v661
    %1096 = vmatpush2.msra.mxu0 %v660
    %1097 = vmatprep.subr.mxu0 %v657
    %1098 = vmatpush2.msra.mxu0 %v656
    %1099 = vmatprep.subr.mxu0 %v653
    %1100 = vmatpush2.msra.mxu0 %v652
    %1101 = vmatprep.subr.mxu0 %v649
    %1102 = vmatpush2.msra.mxu0 %v648
    %1103 = vmatprep.subr.mxu0 %v645
    %1104 = vmatpush2.msra.mxu0 %v644
    %1105 = vmatprep.mubr.f32.mxu0 %v861
    %1106 = vmatmul.mubr.f32.gmra.mxu0 %v857
    %v1107 = vpop.f32.mrf.mxu0
    %v1108 = vadd.f32 %v1037, %v1107
    %v1109 = vpop.f32.mrf.mxu0
    %v1110 = vadd.f32 %v1039, %v1109
    %1111 = vdwg.mxu0
    %1112 = vmatprep.subr.mxu0 %v769
    %1113 = vmatpush1.msra.mxu0 %v768
    %1114 = vmatprep.subr.mxu0 %v765
    %1115 = vmatpush1.msra.mxu0 %v764
    %1116 = vmatprep.subr.mxu0 %v761
    %1117 = vmatpush1.msra.mxu0 %v760
    %1118 = vmatprep.subr.mxu0 %v757
    %1119 = vmatpush1.msra.mxu0 %v756
    %1120 = vmatprep.subr.mxu0 %v753
    %1121 = vmatpush1.msra.mxu0 %v752
    %1122 = vmatprep.subr.mxu0 %v749
    %1123 = vmatpush1.msra.mxu0 %v748
    %1124 = vmatprep.subr.mxu0 %v745
    %1125 = vmatpush1.msra.mxu0 %v744
    %1126 = vmatprep.subr.mxu0 %v741
    %1127 = vmatpush1.msra.mxu0 %v740
    %1128 = vmatprep.subr.mxu0 %v737
    %1129 = vmatpush1.msra.mxu0 %v736
    %1130 = vmatprep.subr.mxu0 %v733
    %1131 = vmatpush1.msra.mxu0 %v732
    %1132 = vmatprep.subr.mxu0 %v729
    %1133 = vmatpush1.msra.mxu0 %v728
    %1134 = vmatprep.subr.mxu0 %v725
    %1135 = vmatpush1.msra.mxu0 %v724
    %1136 = vmatprep.subr.mxu0 %v721
    %1137 = vmatpush1.msra.mxu0 %v720
    %1138 = vmatprep.subr.mxu0 %v717
    %1139 = vmatpush1.msra.mxu0 %v716
    %1140 = vmatprep.subr.mxu0 %v713
    %1141 = vmatpush1.msra.mxu0 %v712
    %1142 = vmatprep.subr.mxu0 %v709
    %1143 = vmatpush1.msra.mxu0 %v708
    %1144 = vmatprep.subr.mxu0 %v833
    %1145 = vmatpush2.msra.mxu0 %v832
    %1146 = vmatprep.subr.mxu0 %v829
    %1147 = vmatpush2.msra.mxu0 %v828
    %1148 = vmatprep.subr.mxu0 %v825
    %1149 = vmatpush2.msra.mxu0 %v824
    %1150 = vmatprep.subr.mxu0 %v821
    %1151 = vmatpush2.msra.mxu0 %v820
    %1152 = vmatprep.subr.mxu0 %v817
    %1153 = vmatpush2.msra.mxu0 %v816
    %1154 = vmatprep.subr.mxu0 %v813
    %1155 = vmatpush2.msra.mxu0 %v812
    %1156 = vmatprep.subr.mxu0 %v809
    %1157 = vmatpush2.msra.mxu0 %v808
    %1158 = vmatprep.subr.mxu0 %v805
    %1159 = vmatpush2.msra.mxu0 %v804
    %1160 = vmatprep.subr.mxu0 %v801
    %1161 = vmatpush2.msra.mxu0 %v800
    %1162 = vmatprep.subr.mxu0 %v797
    %1163 = vmatpush2.msra.mxu0 %v796
    %1164 = vmatprep.subr.mxu0 %v793
    %1165 = vmatpush2.msra.mxu0 %v792
    %1166 = vmatprep.subr.mxu0 %v789
    %1167 = vmatpush2.msra.mxu0 %v788
    %1168 = vmatprep.subr.mxu0 %v785
    %1169 = vmatpush2.msra.mxu0 %v784
    %1170 = vmatprep.subr.mxu0 %v781
    %1171 = vmatpush2.msra.mxu0 %v780
    %1172 = vmatprep.subr.mxu0 %v777
    %1173 = vmatpush2.msra.mxu0 %v776
    %1174 = vmatprep.subr.mxu0 %v773
    %1175 = vmatpush2.msra.mxu0 %v772
    %1176 = vmatprep.mubr.f32.mxu0 %v869
    %1177 = vmatmul.mubr.f32.gmra.mxu0 %v865
    %v1178 = vpop.f32.mrf.mxu0
    %v1179 = vadd.f32 %v1108, %v1178
    %v1180 = vpop.f32.mrf.mxu0
    %v1181 = vadd.f32 %v1110, %v1180
    %1182 = vdwg.mxu0
    %1183 = vmatprep.subr.mxu0 %v387
    %1184 = vmatpush1.msra.mxu0 %v386
    %1185 = vmatprep.subr.mxu0 %v383
    %1186 = vmatpush1.msra.mxu0 %v382
    %1187 = vmatprep.subr.mxu0 %v379
    %1188 = vmatpush1.msra.mxu0 %v378
    %1189 = vmatprep.subr.mxu0 %v375
    %1190 = vmatpush1.msra.mxu0 %v374
    %1191 = vmatprep.subr.mxu0 %v371
    %1192 = vmatpush1.msra.mxu0 %v370
    %1193 = vmatprep.subr.mxu0 %v367
    %1194 = vmatpush1.msra.mxu0 %v366
    %1195 = vmatprep.subr.mxu0 %v363
    %1196 = vmatpush1.msra.mxu0 %v362
    %1197 = vmatprep.subr.mxu0 %v359
    %1198 = vmatpush1.msra.mxu0 %v358
    %1199 = vmatprep.subr.mxu0 %v355
    %1200 = vmatpush1.msra.mxu0 %v354
    %1201 = vmatprep.subr.mxu0 %v351
    %1202 = vmatpush1.msra.mxu0 %v350
    %1203 = vmatprep.subr.mxu0 %v347
    %1204 = vmatpush1.msra.mxu0 %v346
    %1205 = vmatprep.subr.mxu0 %v343
    %1206 = vmatpush1.msra.mxu0 %v342
    %1207 = vmatprep.subr.mxu0 %v339
    %1208 = vmatpush1.msra.mxu0 %v338
    %1209 = vmatprep.subr.mxu0 %v335
    %1210 = vmatpush1.msra.mxu0 %v334
    %1211 = vmatprep.subr.mxu0 %v331
    %1212 = vmatpush1.msra.mxu0 %v330
    %1213 = vmatprep.subr.mxu0 %v327
    %1214 = vmatpush1.msra.mxu0 %v326
    %1215 = vmatprep.subr.mxu0 %v451
    %1216 = vmatpush2.msra.mxu0 %v450
    %1217 = vmatprep.subr.mxu0 %v447
    %1218 = vmatpush2.msra.mxu0 %v446
    %1219 = vmatprep.subr.mxu0 %v443
    %1220 = vmatpush2.msra.mxu0 %v442
    %1221 = vmatprep.subr.mxu0 %v439
    %1222 = vmatpush2.msra.mxu0 %v438
    %1223 = vmatprep.subr.mxu0 %v435
    %1224 = vmatpush2.msra.mxu0 %v434
    %1225 = vmatprep.subr.mxu0 %v431
    %1226 = vmatpush2.msra.mxu0 %v430
    %1227 = vmatprep.subr.mxu0 %v427
    %1228 = vmatpush2.msra.mxu0 %v426
    %1229 = vmatprep.subr.mxu0 %v423
    %1230 = vmatpush2.msra.mxu0 %v422
    %1231 = vmatprep.subr.mxu0 %v419
    %1232 = vmatpush2.msra.mxu0 %v418
    %1233 = vmatprep.subr.mxu0 %v415
    %1234 = vmatpush2.msra.mxu0 %v414
    %1235 = vmatprep.subr.mxu0 %v411
    %1236 = vmatpush2.msra.mxu0 %v410
    %1237 = vmatprep.subr.mxu0 %v407
    %1238 = vmatpush2.msra.mxu0 %v406
    %1239 = vmatprep.subr.mxu0 %v403
    %1240 = vmatpush2.msra.mxu0 %v402
    %1241 = vmatprep.subr.mxu0 %v399
    %1242 = vmatpush2.msra.mxu0 %v398
    %1243 = vmatprep.subr.mxu0 %v395
    %1244 = vmatpush2.msra.mxu0 %v394
    %1245 = vmatprep.subr.mxu0 %v391
    %1246 = vmatpush2.msra.mxu0 %v390
    %1247 = vmatprep.mubr.f32.mxu0 %v845
    %1248 = vmatmul.mubr.f32.gmra.mxu0 %v841
    %v1249 = vpop.f32.mrf.mxu0
    %v1250 = vadd.f32 %v890, %v1249
    %v1251 = vpop.f32.mrf.mxu0
    %v1252 = vadd.f32 %v894, %v1251
    %1253 = vdwg.mxu0
    %1254 = vmatprep.subr.mxu0 %v515
    %1255 = vmatpush1.msra.mxu0 %v514
    %1256 = vmatprep.subr.mxu0 %v511
    %1257 = vmatpush1.msra.mxu0 %v510
    %1258 = vmatprep.subr.mxu0 %v507
    %1259 = vmatpush1.msra.mxu0 %v506
    %1260 = vmatprep.subr.mxu0 %v503
    %1261 = vmatpush1.msra.mxu0 %v502
    %1262 = vmatprep.subr.mxu0 %v499
    %1263 = vmatpush1.msra.mxu0 %v498
    %1264 = vmatprep.subr.mxu0 %v495
    %1265 = vmatpush1.msra.mxu0 %v494
    %1266 = vmatprep.subr.mxu0 %v491
    %1267 = vmatpush1.msra.mxu0 %v490
    %1268 = vmatprep.subr.mxu0 %v487
    %1269 = vmatpush1.msra.mxu0 %v486
    %1270 = vmatprep.subr.mxu0 %v483
    %1271 = vmatpush1.msra.mxu0 %v482
    %1272 = vmatprep.subr.mxu0 %v479
    %1273 = vmatpush1.msra.mxu0 %v478
    %1274 = vmatprep.subr.mxu0 %v475
    %1275 = vmatpush1.msra.mxu0 %v474
    %1276 = vmatprep.subr.mxu0 %v471
    %1277 = vmatpush1.msra.mxu0 %v470
    %1278 = vmatprep.subr.mxu0 %v467
    %1279 = vmatpush1.msra.mxu0 %v466
    %1280 = vmatprep.subr.mxu0 %v463
    %1281 = vmatpush1.msra.mxu0 %v462
    %1282 = vmatprep.subr.mxu0 %v459
    %1283 = vmatpush1.msra.mxu0 %v458
    %1284 = vmatprep.subr.mxu0 %v455
    %1285 = vmatpush1.msra.mxu0 %v454
    %1286 = vmatprep.subr.mxu0 %v579
    %1287 = vmatpush2.msra.mxu0 %v578
    %1288 = vmatprep.subr.mxu0 %v575
    %1289 = vmatpush2.msra.mxu0 %v574
    %1290 = vmatprep.subr.mxu0 %v571
    %1291 = vmatpush2.msra.mxu0 %v570
    %1292 = vmatprep.subr.mxu0 %v567
    %1293 = vmatpush2.msra.mxu0 %v566
    %1294 = vmatprep.subr.mxu0 %v563
    %1295 = vmatpush2.msra.mxu0 %v562
    %1296 = vmatprep.subr.mxu0 %v559
    %1297 = vmatpush2.msra.mxu0 %v558
    %1298 = vmatprep.subr.mxu0 %v555
    %1299 = vmatpush2.msra.mxu0 %v554
    %1300 = vmatprep.subr.mxu0 %v551
    %1301 = vmatpush2.msra.mxu0 %v550
    %1302 = vmatprep.subr.mxu0 %v547
    %1303 = vmatpush2.msra.mxu0 %v546
    %1304 = vmatprep.subr.mxu0 %v543
    %1305 = vmatpush2.msra.mxu0 %v542
    %1306 = vmatprep.subr.mxu0 %v539
    %1307 = vmatpush2.msra.mxu0 %v538
    %1308 = vmatprep.subr.mxu0 %v535
    %1309 = vmatpush2.msra.mxu0 %v534
    %1310 = vmatprep.subr.mxu0 %v531
    %1311 = vmatpush2.msra.mxu0 %v530
    %1312 = vmatprep.subr.mxu0 %v527
    %1313 = vmatpush2.msra.mxu0 %v526
    %1314 = vmatprep.subr.mxu0 %v523
    %1315 = vmatpush2.msra.mxu0 %v522
    %1316 = vmatprep.subr.mxu0 %v519
    %1317 = vmatpush2.msra.mxu0 %v518
    %1318 = vmatprep.mubr.f32.mxu0 %v853
    %1319 = vmatmul.mubr.f32.gmra.mxu0 %v849
    %v1320 = vpop.f32.mrf.mxu0
    %v1321 = vadd.f32 %v1250, %v1320
    %v1322 = vpop.f32.mrf.mxu0
    %v1323 = vadd.f32 %v1252, %v1322
    %1324 = vdwg.mxu0
    %1325 = vmatprep.subr.mxu0 %v643
    %1326 = vmatpush1.msra.mxu0 %v642
    %1327 = vmatprep.subr.mxu0 %v639
    %1328 = vmatpush1.msra.mxu0 %v638
    %1329 = vmatprep.subr.mxu0 %v635
    %1330 = vmatpush1.msra.mxu0 %v634
    %1331 = vmatprep.subr.mxu0 %v631
    %1332 = vmatpush1.msra.mxu0 %v630
    %1333 = vmatprep.subr.mxu0 %v627
    %1334 = vmatpush1.msra.mxu0 %v626
    %1335 = vmatprep.subr.mxu0 %v623
    %1336 = vmatpush1.msra.mxu0 %v622
    %1337 = vmatprep.subr.mxu0 %v619
    %1338 = vmatpush1.msra.mxu0 %v618
    %1339 = vmatprep.subr.mxu0 %v615
    %1340 = vmatpush1.msra.mxu0 %v614
    %1341 = vmatprep.subr.mxu0 %v611
    %1342 = vmatpush1.msra.mxu0 %v610
    %1343 = vmatprep.subr.mxu0 %v607
    %1344 = vmatpush1.msra.mxu0 %v606
    %1345 = vmatprep.subr.mxu0 %v603
    %1346 = vmatpush1.msra.mxu0 %v602
    %1347 = vmatprep.subr.mxu0 %v599
    %1348 = vmatpush1.msra.mxu0 %v598
    %1349 = vmatprep.subr.mxu0 %v595
    %1350 = vmatpush1.msra.mxu0 %v594
    %1351 = vmatprep.subr.mxu0 %v591
    %1352 = vmatpush1.msra.mxu0 %v590
    %1353 = vmatprep.subr.mxu0 %v587
    %1354 = vmatpush1.msra.mxu0 %v586
    %1355 = vmatprep.subr.mxu0 %v583
    %1356 = vmatpush1.msra.mxu0 %v582
    %1357 = vmatprep.subr.mxu0 %v707
    %1358 = vmatpush2.msra.mxu0 %v706
    %1359 = vmatprep.subr.mxu0 %v703
    %1360 = vmatpush2.msra.mxu0 %v702
    %1361 = vmatprep.subr.mxu0 %v699
    %1362 = vmatpush2.msra.mxu0 %v698
    %1363 = vmatprep.subr.mxu0 %v695
    %1364 = vmatpush2.msra.mxu0 %v694
    %1365 = vmatprep.subr.mxu0 %v691
    %1366 = vmatpush2.msra.mxu0 %v690
    %1367 = vmatprep.subr.mxu0 %v687
    %1368 = vmatpush2.msra.mxu0 %v686
    %1369 = vmatprep.subr.mxu0 %v683
    %1370 = vmatpush2.msra.mxu0 %v682
    %1371 = vmatprep.subr.mxu0 %v679
    %1372 = vmatpush2.msra.mxu0 %v678
    %1373 = vmatprep.subr.mxu0 %v675
    %1374 = vmatpush2.msra.mxu0 %v674
    %1375 = vmatprep.subr.mxu0 %v671
    %1376 = vmatpush2.msra.mxu0 %v670
    %1377 = vmatprep.subr.mxu0 %v667
    %1378 = vmatpush2.msra.mxu0 %v666
    %1379 = vmatprep.subr.mxu0 %v663
    %1380 = vmatpush2.msra.mxu0 %v662
    %1381 = vmatprep.subr.mxu0 %v659
    %1382 = vmatpush2.msra.mxu0 %v658
    %1383 = vmatprep.subr.mxu0 %v655
    %1384 = vmatpush2.msra.mxu0 %v654
    %1385 = vmatprep.subr.mxu0 %v651
    %1386 = vmatpush2.msra.mxu0 %v650
    %1387 = vmatprep.subr.mxu0 %v647
    %1388 = vmatpush2.msra.mxu0 %v646
    %1389 = vmatprep.mubr.f32.mxu0 %v861
    %1390 = vmatmul.mubr.f32.gmra.mxu0 %v857
    %v1391 = vpop.f32.mrf.mxu0
    %v1392 = vadd.f32 %v1321, %v1391
    %v1393 = vpop.f32.mrf.mxu0
    %v1394 = vadd.f32 %v1323, %v1393
    %1395 = vdwg.mxu0
    %1396 = vmatprep.subr.mxu0 %v771
    %1397 = vmatpush1.msra.mxu0 %v770
    %1398 = vmatprep.subr.mxu0 %v767
    %1399 = vmatpush1.msra.mxu0 %v766
    %1400 = vmatprep.subr.mxu0 %v763
    %1401 = vmatpush1.msra.mxu0 %v762
    %1402 = vmatprep.subr.mxu0 %v759
    %1403 = vmatpush1.msra.mxu0 %v758
    %1404 = vmatprep.subr.mxu0 %v755
    %1405 = vmatpush1.msra.mxu0 %v754
    %1406 = vmatprep.subr.mxu0 %v751
    %1407 = vmatpush1.msra.mxu0 %v750
    %1408 = vmatprep.subr.mxu0 %v747
    %1409 = vmatpush1.msra.mxu0 %v746
    %1410 = vmatprep.subr.mxu0 %v743
    %1411 = vmatpush1.msra.mxu0 %v742
    %1412 = vmatprep.subr.mxu0 %v739
    %1413 = vmatpush1.msra.mxu0 %v738
    %1414 = vmatprep.subr.mxu0 %v735
    %1415 = vmatpush1.msra.mxu0 %v734
    %1416 = vmatprep.subr.mxu0 %v731
    %1417 = vmatpush1.msra.mxu0 %v730
    %1418 = vmatprep.subr.mxu0 %v727
    %1419 = vmatpush1.msra.mxu0 %v726
    %1420 = vmatprep.subr.mxu0 %v723
    %1421 = vmatpush1.msra.mxu0 %v722
    %1422 = vmatprep.subr.mxu0 %v719
    %1423 = vmatpush1.msra.mxu0 %v718
    %1424 = vmatprep.subr.mxu0 %v715
    %1425 = vmatpush1.msra.mxu0 %v714
    %1426 = vmatprep.subr.mxu0 %v711
    %1427 = vmatpush1.msra.mxu0 %v710
    %1428 = vmatprep.subr.mxu0 %v835
    %1429 = vmatpush2.msra.mxu0 %v834
    %1430 = vmatprep.subr.mxu0 %v831
    %1431 = vmatpush2.msra.mxu0 %v830
    %1432 = vmatprep.subr.mxu0 %v827
    %1433 = vmatpush2.msra.mxu0 %v826
    %1434 = vmatprep.subr.mxu0 %v823
    %1435 = vmatpush2.msra.mxu0 %v822
    %1436 = vmatprep.subr.mxu0 %v819
    %1437 = vmatpush2.msra.mxu0 %v818
    %1438 = vmatprep.subr.mxu0 %v815
    %1439 = vmatpush2.msra.mxu0 %v814
    %1440 = vmatprep.subr.mxu0 %v811
    %1441 = vmatpush2.msra.mxu0 %v810
    %1442 = vmatprep.subr.mxu0 %v807
    %1443 = vmatpush2.msra.mxu0 %v806
    %1444 = vmatprep.subr.mxu0 %v803
    %1445 = vmatpush2.msra.mxu0 %v802
    %1446 = vmatprep.subr.mxu0 %v799
    %1447 = vmatpush2.msra.mxu0 %v798
    %1448 = vmatprep.subr.mxu0 %v795
    %1449 = vmatpush2.msra.mxu0 %v794
    %1450 = vmatprep.subr.mxu0 %v791
    %1451 = vmatpush2.msra.mxu0 %v790
    %1452 = vmatprep.subr.mxu0 %v787
    %1453 = vmatpush2.msra.mxu0 %v786
    %1454 = vmatprep.subr.mxu0 %v783
    %1455 = vmatpush2.msra.mxu0 %v782
    %1456 = vmatprep.subr.mxu0 %v779
    %1457 = vmatpush2.msra.mxu0 %v778
    %1458 = vmatprep.subr.mxu0 %v775
    %1459 = vmatpush2.msra.mxu0 %v774
    %1460 = vmatprep.mubr.f32.mxu0 %v869
    %1461 = vmatmul.mubr.f32.gmra.mxu0 %v865
    %v1462 = vpop.f32.mrf.mxu0
    %v1463 = vadd.f32 %v1392, %v1462
    %v1464 = vpop.f32.mrf.mxu0
    %v1465 = vadd.f32 %v1394, %v1464
    %1466 = vdwg.mxu0
    %vm1467 = vcmp.gt.f32.partialorder %v1179, 0.0
    %vm1468 = vcmp.gt.f32.partialorder %v1181, 0.0
    %vm1469 = vcmp.gt.f32.partialorder %v1463, 0.0
    %vm1470 = vcmp.gt.f32.partialorder %v1465, 0.0
    %v1471 = vmul.f32 %v1179, 0.2
    %v1472 = vmul.f32 %v1181, 0.2
    %v1473 = vmul.f32 %v1463, 0.2
    %v1474 = vmul.f32 %v1465, 0.2
    %v1475 = vsel %vm1467, %v1179, %v1471
    %v1476 = vsel %vm1468, %v1181, %v1472
    %v1477 = vsel %vm1469, %v1463, %v1473
    %v1478 = vsel %vm1470, %v1465, %v1474
    %v1479 = vld [vmem:[#allocation8] sm:$0xff]
    %v1480 = vld [vmem:[#allocation8 + $0x8] sm:$0xff]
    %v1481 = vld [vmem:[#allocation8 + $0x10] sm:$0xff]
    %v1482 = vld [vmem:[#allocation8 + $0x18] sm:$0xff]
    %v1483 = vld [vmem:[#allocation8 + $0x20] sm:$0xff]
    %v1484 = vld [vmem:[#allocation8 + $0x28] sm:$0xff]
    %v1485 = vld [vmem:[#allocation8 + $0x30] sm:$0xff]
    %v1486 = vld [vmem:[#allocation8 + $0x38] sm:$0xff]
    %v1487 = vld [vmem:[#allocation8 + $0x40] sm:$0xff]
    %v1488 = vld [vmem:[#allocation8 + $0x48] sm:$0xff]
    %v1489 = vld [vmem:[#allocation8 + $0x50] sm:$0xff]
    %v1490 = vld [vmem:[#allocation8 + $0x58] sm:$0xff]
    %v1491 = vld [vmem:[#allocation8 + $0x60] sm:$0xff]
    %v1492 = vld [vmem:[#allocation8 + $0x68] sm:$0xff]
    %v1493 = vld [vmem:[#allocation8 + $0x70] sm:$0xff]
    %v1494 = vld [vmem:[#allocation8 + $0x78] sm:$0xff]
    %v1495 = vld [vmem:[#allocation8 + $0x80] sm:$0xff]
    %v1496 = vld [vmem:[#allocation8 + $0x88] sm:$0xff]
    %v1497 = vld [vmem:[#allocation8 + $0x90] sm:$0xff]
    %v1498 = vld [vmem:[#allocation8 + $0x98] sm:$0xff]
    %v1499 = vld [vmem:[#allocation8 + $0xa0] sm:$0xff]
    %v1500 = vld [vmem:[#allocation8 + $0xa8] sm:$0xff]
    %v1501 = vld [vmem:[#allocation8 + $0xb0] sm:$0xff]
    %v1502 = vld [vmem:[#allocation8 + $0xb8] sm:$0xff]
    %v1503 = vld [vmem:[#allocation8 + $0xc0] sm:$0xff]
    %v1504 = vld [vmem:[#allocation8 + $0xc8] sm:$0xff]
    %v1505 = vld [vmem:[#allocation8 + $0xd0] sm:$0xff]
    %v1506 = vld [vmem:[#allocation8 + $0xd8] sm:$0xff]
    %v1507 = vld [vmem:[#allocation8 + $0xe0] sm:$0xff]
    %v1508 = vld [vmem:[#allocation8 + $0xe8] sm:$0xff]
    %v1509 = vld [vmem:[#allocation8 + $0xf0] sm:$0xff]
    %v1510 = vld [vmem:[#allocation8 + $0xf8] sm:$0xff]
    %v1511 = vld [vmem:[#allocation8 + $0x100] sm:$0xff]
    %v1512 = vld [vmem:[#allocation8 + $0x108] sm:$0xff]
    %v1513 = vld [vmem:[#allocation8 + $0x110] sm:$0xff]
    %v1514 = vld [vmem:[#allocation8 + $0x118] sm:$0xff]
    %v1515 = vld [vmem:[#allocation8 + $0x120] sm:$0xff]
    %v1516 = vld [vmem:[#allocation8 + $0x128] sm:$0xff]
    %v1517 = vld [vmem:[#allocation8 + $0x130] sm:$0xff]
    %v1518 = vld [vmem:[#allocation8 + $0x138] sm:$0xff]
    %v1519 = vld [vmem:[#allocation8 + $0x140] sm:$0xff]
    %v1520 = vld [vmem:[#allocation8 + $0x148] sm:$0xff]
    %v1521 = vld [vmem:[#allocation8 + $0x150] sm:$0xff]
    %v1522 = vld [vmem:[#allocation8 + $0x158] sm:$0xff]
    %v1523 = vld [vmem:[#allocation8 + $0x160] sm:$0xff]
    %v1524 = vld [vmem:[#allocation8 + $0x168] sm:$0xff]
    %v1525 = vld [vmem:[#allocation8 + $0x170] sm:$0xff]
    %v1526 = vld [vmem:[#allocation8 + $0x178] sm:$0xff]
    %v1527 = vld [vmem:[#allocation8 + $0x180] sm:$0xff]
    %v1528 = vld [vmem:[#allocation8 + $0x188] sm:$0xff]
    %v1529 = vld [vmem:[#allocation8 + $0x190] sm:$0xff]
    %v1530 = vld [vmem:[#allocation8 + $0x198] sm:$0xff]
    %v1531 = vld [vmem:[#allocation8 + $0x1a0] sm:$0xff]
    %v1532 = vld [vmem:[#allocation8 + $0x1a8] sm:$0xff]
    %v1533 = vld [vmem:[#allocation8 + $0x1b0] sm:$0xff]
    %v1534 = vld [vmem:[#allocation8 + $0x1b8] sm:$0xff]
    %v1535 = vld [vmem:[#allocation8 + $0x1c0] sm:$0xff]
    %v1536 = vld [vmem:[#allocation8 + $0x1c8] sm:$0xff]
    %v1537 = vld [vmem:[#allocation8 + $0x1d0] sm:$0xff]
    %v1538 = vld [vmem:[#allocation8 + $0x1d8] sm:$0xff]
    %v1539 = vld [vmem:[#allocation8 + $0x1e0] sm:$0xff]
    %v1540 = vld [vmem:[#allocation8 + $0x1e8] sm:$0xff]
    %v1541 = vld [vmem:[#allocation8 + $0x1f0] sm:$0xff]
    %v1542 = vld [vmem:[#allocation8 + $0x1f8] sm:$0xff]
    %v1543 = vunpack.c.l.bf16 %v1479
    %v1544 = vunpack.c.h.bf16 %v1479
    %v1545 = vunpack.c.l.bf16 %v1480
    %v1546 = vunpack.c.h.bf16 %v1480
    %v1547 = vunpack.c.l.bf16 %v1481
    %v1548 = vunpack.c.h.bf16 %v1481
    %v1549 = vunpack.c.l.bf16 %v1482
    %v1550 = vunpack.c.h.bf16 %v1482
    %v1551 = vunpack.c.l.bf16 %v1483
    %v1552 = vunpack.c.h.bf16 %v1483
    %v1553 = vunpack.c.l.bf16 %v1484
    %v1554 = vunpack.c.h.bf16 %v1484
    %v1555 = vunpack.c.l.bf16 %v1485
    %v1556 = vunpack.c.h.bf16 %v1485
    %v1557 = vunpack.c.l.bf16 %v1486
    %v1558 = vunpack.c.h.bf16 %v1486
    %v1559 = vunpack.c.l.bf16 %v1487
    %v1560 = vunpack.c.h.bf16 %v1487
    %v1561 = vunpack.c.l.bf16 %v1488
    %v1562 = vunpack.c.h.bf16 %v1488
    %v1563 = vunpack.c.l.bf16 %v1489
    %v1564 = vunpack.c.h.bf16 %v1489
    %v1565 = vunpack.c.l.bf16 %v1490
    %v1566 = vunpack.c.h.bf16 %v1490
    %v1567 = vunpack.c.l.bf16 %v1491
    %v1568 = vunpack.c.h.bf16 %v1491
    %v1569 = vunpack.c.l.bf16 %v1492
    %v1570 = vunpack.c.h.bf16 %v1492
    %v1571 = vunpack.c.l.bf16 %v1493
    %v1572 = vunpack.c.h.bf16 %v1493
    %v1573 = vunpack.c.l.bf16 %v1494
    %v1574 = vunpack.c.h.bf16 %v1494
    %v1575 = vunpack.c.l.bf16 %v1495
    %v1576 = vunpack.c.h.bf16 %v1495
    %v1577 = vunpack.c.l.bf16 %v1496
    %v1578 = vunpack.c.h.bf16 %v1496
    %v1579 = vunpack.c.l.bf16 %v1497
    %v1580 = vunpack.c.h.bf16 %v1497
    %v1581 = vunpack.c.l.bf16 %v1498
    %v1582 = vunpack.c.h.bf16 %v1498
    %v1583 = vunpack.c.l.bf16 %v1499
    %v1584 = vunpack.c.h.bf16 %v1499
    %v1585 = vunpack.c.l.bf16 %v1500
    %v1586 = vunpack.c.h.bf16 %v1500
    %v1587 = vunpack.c.l.bf16 %v1501
    %v1588 = vunpack.c.h.bf16 %v1501
    %v1589 = vunpack.c.l.bf16 %v1502
    %v1590 = vunpack.c.h.bf16 %v1502
    %v1591 = vunpack.c.l.bf16 %v1503
    %v1592 = vunpack.c.h.bf16 %v1503
    %v1593 = vunpack.c.l.bf16 %v1504
    %v1594 = vunpack.c.h.bf16 %v1504
    %v1595 = vunpack.c.l.bf16 %v1505
    %v1596 = vunpack.c.h.bf16 %v1505
    %v1597 = vunpack.c.l.bf16 %v1506
    %v1598 = vunpack.c.h.bf16 %v1506
    %v1599 = vunpack.c.l.bf16 %v1507
    %v1600 = vunpack.c.h.bf16 %v1507
    %v1601 = vunpack.c.l.bf16 %v1508
    %v1602 = vunpack.c.h.bf16 %v1508
    %v1603 = vunpack.c.l.bf16 %v1509
    %v1604 = vunpack.c.h.bf16 %v1509
    %v1605 = vunpack.c.l.bf16 %v1510
    %v1606 = vunpack.c.h.bf16 %v1510
    %v1607 = vunpack.c.l.bf16 %v1511
    %v1608 = vunpack.c.h.bf16 %v1511
    %v1609 = vunpack.c.l.bf16 %v1512
    %v1610 = vunpack.c.h.bf16 %v1512
    %v1611 = vunpack.c.l.bf16 %v1513
    %v1612 = vunpack.c.h.bf16 %v1513
    %v1613 = vunpack.c.l.bf16 %v1514
    %v1614 = vunpack.c.h.bf16 %v1514
    %v1615 = vunpack.c.l.bf16 %v1515
    %v1616 = vunpack.c.h.bf16 %v1515
    %v1617 = vunpack.c.l.bf16 %v1516
    %v1618 = vunpack.c.h.bf16 %v1516
    %v1619 = vunpack.c.l.bf16 %v1517
    %v1620 = vunpack.c.h.bf16 %v1517
    %v1621 = vunpack.c.l.bf16 %v1518
    %v1622 = vunpack.c.h.bf16 %v1518
    %v1623 = vunpack.c.l.bf16 %v1519
    %v1624 = vunpack.c.h.bf16 %v1519
    %v1625 = vunpack.c.l.bf16 %v1520
    %v1626 = vunpack.c.h.bf16 %v1520
    %v1627 = vunpack.c.l.bf16 %v1521
    %v1628 = vunpack.c.h.bf16 %v1521
    %v1629 = vunpack.c.l.bf16 %v1522
    %v1630 = vunpack.c.h.bf16 %v1522
    %v1631 = vunpack.c.l.bf16 %v1523
    %v1632 = vunpack.c.h.bf16 %v1523
    %v1633 = vunpack.c.l.bf16 %v1524
    %v1634 = vunpack.c.h.bf16 %v1524
    %v1635 = vunpack.c.l.bf16 %v1525
    %v1636 = vunpack.c.h.bf16 %v1525
    %v1637 = vunpack.c.l.bf16 %v1526
    %v1638 = vunpack.c.h.bf16 %v1526
    %v1639 = vunpack.c.l.bf16 %v1527
    %v1640 = vunpack.c.h.bf16 %v1527
    %v1641 = vunpack.c.l.bf16 %v1528
    %v1642 = vunpack.c.h.bf16 %v1528
    %v1643 = vunpack.c.l.bf16 %v1529
    %v1644 = vunpack.c.h.bf16 %v1529
    %v1645 = vunpack.c.l.bf16 %v1530
    %v1646 = vunpack.c.h.bf16 %v1530
    %v1647 = vunpack.c.l.bf16 %v1531
    %v1648 = vunpack.c.h.bf16 %v1531
    %v1649 = vunpack.c.l.bf16 %v1532
    %v1650 = vunpack.c.h.bf16 %v1532
    %v1651 = vunpack.c.l.bf16 %v1533
    %v1652 = vunpack.c.h.bf16 %v1533
    %v1653 = vunpack.c.l.bf16 %v1534
    %v1654 = vunpack.c.h.bf16 %v1534
    %v1655 = vunpack.c.l.bf16 %v1535
    %v1656 = vunpack.c.h.bf16 %v1535
    %v1657 = vunpack.c.l.bf16 %v1536
    %v1658 = vunpack.c.h.bf16 %v1536
    %v1659 = vunpack.c.l.bf16 %v1537
    %v1660 = vunpack.c.h.bf16 %v1537
    %v1661 = vunpack.c.l.bf16 %v1538
    %v1662 = vunpack.c.h.bf16 %v1538
    %v1663 = vunpack.c.l.bf16 %v1539
    %v1664 = vunpack.c.h.bf16 %v1539
    %v1665 = vunpack.c.l.bf16 %v1540
    %v1666 = vunpack.c.h.bf16 %v1540
    %v1667 = vunpack.c.l.bf16 %v1541
    %v1668 = vunpack.c.h.bf16 %v1541
    %v1669 = vunpack.c.l.bf16 %v1542
    %v1670 = vunpack.c.h.bf16 %v1542
    %v1671 = vld [vmem:[%s4] sm:$0x3]
    %v1673 = vlaneseq
    %v1674 = vshrl.u32 %v1673, 7
    %v1675 = vsub.s32 0, %v1674
    %v1676 = vrot.slane %v1671, %v1675
    %v1677 = vlaneseq
    %v1678 = vshrl.u32 %v1677, 7
    %v1679 = vsub.s32 1, %v1678
    %v1680 = vrot.slane %v1671, %v1679
    %1683 = vmatprep.subr.mxu0 %v1574
    %1684 = vmatpush1.msra.mxu0 %v1573
    %1685 = vmatprep.subr.mxu0 %v1572
    %1686 = vmatpush1.msra.mxu0 %v1571
    %1687 = vmatprep.subr.mxu0 %v1570
    %1688 = vmatpush1.msra.mxu0 %v1569
    %1689 = vmatprep.subr.mxu0 %v1568
    %1690 = vmatpush1.msra.mxu0 %v1567
    %1691 = vmatprep.subr.mxu0 %v1566
    %1692 = vmatpush1.msra.mxu0 %v1565
    %1693 = vmatprep.subr.mxu0 %v1564
    %1694 = vmatpush1.msra.mxu0 %v1563
    %1695 = vmatprep.subr.mxu0 %v1562
    %1696 = vmatpush1.msra.mxu0 %v1561
    %1697 = vmatprep.subr.mxu0 %v1560
    %1698 = vmatpush1.msra.mxu0 %v1559
    %1699 = vmatprep.subr.mxu0 %v1558
    %1700 = vmatpush1.msra.mxu0 %v1557
    %1701 = vmatprep.subr.mxu0 %v1556
    %1702 = vmatpush1.msra.mxu0 %v1555
    %1703 = vmatprep.subr.mxu0 %v1554
    %1704 = vmatpush1.msra.mxu0 %v1553
    %1705 = vmatprep.subr.mxu0 %v1552
    %1706 = vmatpush1.msra.mxu0 %v1551
    %1707 = vmatprep.subr.mxu0 %v1550
    %1708 = vmatpush1.msra.mxu0 %v1549
    %1709 = vmatprep.subr.mxu0 %v1548
    %1710 = vmatpush1.msra.mxu0 %v1547
    %1711 = vmatprep.subr.mxu0 %v1546
    %1712 = vmatpush1.msra.mxu0 %v1545
    %1713 = vmatprep.subr.mxu0 %v1544
    %1714 = vmatpush1.msra.mxu0 %v1543
    %1715 = vmatprep.subr.mxu0 %v1606
    %1716 = vmatpush2.msra.mxu0 %v1605
    %1717 = vmatprep.subr.mxu0 %v1604
    %1718 = vmatpush2.msra.mxu0 %v1603
    %1719 = vmatprep.subr.mxu0 %v1602
    %1720 = vmatpush2.msra.mxu0 %v1601
    %1721 = vmatprep.subr.mxu0 %v1600
    %1722 = vmatpush2.msra.mxu0 %v1599
    %1723 = vmatprep.subr.mxu0 %v1598
    %1724 = vmatpush2.msra.mxu0 %v1597
    %1725 = vmatprep.subr.mxu0 %v1596
    %1726 = vmatpush2.msra.mxu0 %v1595
    %1727 = vmatprep.subr.mxu0 %v1594
    %1728 = vmatpush2.msra.mxu0 %v1593
    %1729 = vmatprep.subr.mxu0 %v1592
    %1730 = vmatpush2.msra.mxu0 %v1591
    %1731 = vmatprep.subr.mxu0 %v1590
    %1732 = vmatpush2.msra.mxu0 %v1589
    %1733 = vmatprep.subr.mxu0 %v1588
    %1734 = vmatpush2.msra.mxu0 %v1587
    %1735 = vmatprep.subr.mxu0 %v1586
    %1736 = vmatpush2.msra.mxu0 %v1585
    %1737 = vmatprep.subr.mxu0 %v1584
    %1738 = vmatpush2.msra.mxu0 %v1583
    %1739 = vmatprep.subr.mxu0 %v1582
    %1740 = vmatpush2.msra.mxu0 %v1581
    %1741 = vmatprep.subr.mxu0 %v1580
    %1742 = vmatpush2.msra.mxu0 %v1579
    %1743 = vmatprep.subr.mxu0 %v1578
    %1744 = vmatpush2.msra.mxu0 %v1577
    %1745 = vmatprep.subr.mxu0 %v1576
    %1746 = vmatpush2.msra.mxu0 %v1575
    %1747 = vmatprep.mubr.f32.mxu0 %v1476
    %1748 = vmatmul.mubr.f32.gmra.mxu0 %v1475
    %v1749 = vpop.f32.mrf.mxu0
    %v1750 = vadd.f32 %v1676, %v1749
    %v1751 = vpop.f32.mrf.mxu0
    %v1752 = vadd.f32 %v1680, %v1751
    %1753 = vdwg.mxu0
    %1754 = vmatprep.subr.mxu0 %v1638
    %1755 = vmatpush1.msra.mxu0 %v1637
    %1756 = vmatprep.subr.mxu0 %v1636
    %1757 = vmatpush1.msra.mxu0 %v1635
    %1758 = vmatprep.subr.mxu0 %v1634
    %1759 = vmatpush1.msra.mxu0 %v1633
    %1760 = vmatprep.subr.mxu0 %v1632
    %1761 = vmatpush1.msra.mxu0 %v1631
    %1762 = vmatprep.subr.mxu0 %v1630
    %1763 = vmatpush1.msra.mxu0 %v1629
    %1764 = vmatprep.subr.mxu0 %v1628
    %1765 = vmatpush1.msra.mxu0 %v1627
    %1766 = vmatprep.subr.mxu0 %v1626
    %1767 = vmatpush1.msra.mxu0 %v1625
    %1768 = vmatprep.subr.mxu0 %v1624
    %1769 = vmatpush1.msra.mxu0 %v1623
    %1770 = vmatprep.subr.mxu0 %v1622
    %1771 = vmatpush1.msra.mxu0 %v1621
    %1772 = vmatprep.subr.mxu0 %v1620
    %1773 = vmatpush1.msra.mxu0 %v1619
    %1774 = vmatprep.subr.mxu0 %v1618
    %1775 = vmatpush1.msra.mxu0 %v1617
    %1776 = vmatprep.subr.mxu0 %v1616
    %1777 = vmatpush1.msra.mxu0 %v1615
    %1778 = vmatprep.subr.mxu0 %v1614
    %1779 = vmatpush1.msra.mxu0 %v1613
    %1780 = vmatprep.subr.mxu0 %v1612
    %1781 = vmatpush1.msra.mxu0 %v1611
    %1782 = vmatprep.subr.mxu0 %v1610
    %1783 = vmatpush1.msra.mxu0 %v1609
    %1784 = vmatprep.subr.mxu0 %v1608
    %1785 = vmatpush1.msra.mxu0 %v1607
    %1786 = vmatprep.subr.mxu0 %v1670
    %1787 = vmatpush2.msra.mxu0 %v1669
    %1788 = vmatprep.subr.mxu0 %v1668
    %1789 = vmatpush2.msra.mxu0 %v1667
    %1790 = vmatprep.subr.mxu0 %v1666
    %1791 = vmatpush2.msra.mxu0 %v1665
    %1792 = vmatprep.subr.mxu0 %v1664
    %1793 = vmatpush2.msra.mxu0 %v1663
    %1794 = vmatprep.subr.mxu0 %v1662
    %1795 = vmatpush2.msra.mxu0 %v1661
    %1796 = vmatprep.subr.mxu0 %v1660
    %1797 = vmatpush2.msra.mxu0 %v1659
    %1798 = vmatprep.subr.mxu0 %v1658
    %1799 = vmatpush2.msra.mxu0 %v1657
    %1800 = vmatprep.subr.mxu0 %v1656
    %1801 = vmatpush2.msra.mxu0 %v1655
    %1802 = vmatprep.subr.mxu0 %v1654
    %1803 = vmatpush2.msra.mxu0 %v1653
    %1804 = vmatprep.subr.mxu0 %v1652
    %1805 = vmatpush2.msra.mxu0 %v1651
    %1806 = vmatprep.subr.mxu0 %v1650
    %1807 = vmatpush2.msra.mxu0 %v1649
    %1808 = vmatprep.subr.mxu0 %v1648
    %1809 = vmatpush2.msra.mxu0 %v1647
    %1810 = vmatprep.subr.mxu0 %v1646
    %1811 = vmatpush2.msra.mxu0 %v1645
    %1812 = vmatprep.subr.mxu0 %v1644
    %1813 = vmatpush2.msra.mxu0 %v1643
    %1814 = vmatprep.subr.mxu0 %v1642
    %1815 = vmatpush2.msra.mxu0 %v1641
    %1816 = vmatprep.subr.mxu0 %v1640
    %1817 = vmatpush2.msra.mxu0 %v1639
    %1818 = vmatprep.mubr.f32.mxu0 %v1478
    %1819 = vmatmul.mubr.f32.gmra.mxu0 %v1477
    %v1820 = vpop.f32.mrf.mxu0
    %v1821 = vadd.f32 %v1750, %v1820
    %v1822 = vpop.f32.mrf.mxu0
    %v1823 = vadd.f32 %v1752, %v1822
    %1824 = vdwg.mxu0
    %vm1825 = vcmp.gt.f32.partialorder %v1821, 0.0
    %vm1826 = vcmp.gt.f32.partialorder %v1823, 0.0
    %v1827 = vmul.f32 %v1821, 0.2
    %v1828 = vmul.f32 %v1823, 0.2
    %v1829 = vsel %vm1825, %v1821, %v1827
    %v1830 = vsel %vm1826, %v1823, %v1828
    %v1831 = vld [vmem:[%s5] sm:$0x3]
    %v1833 = vlaneseq
    %v1834 = vshrl.u32 %v1833, 7
    %v1835 = vsub.s32 0, %v1834
    %v1836 = vrot.slane %v1831, %v1835
    %v1837 = vlaneseq
    %v1838 = vshrl.u32 %v1837, 7
    %v1839 = vsub.s32 1, %v1838
    %v1840 = vrot.slane %v1831, %v1839
    %v1843 = vmul.f32 %v1829, %v1836
    %v1844 = vmul.f32 %v1830, %v1840
    %vm1845 = vcmask 1040384
    %v1846 = vsel %vm1845, %v1843, 0.0
    %v1847 = vsel %vm1845, %v1844, 0.0
    %v1848 = vadd.f32 %v1846, %v1847
    %1849 = vadd.xlane.f32.xlu0 %v1848
    %v1850 = vpop.xlane.xlu0 %1849
    %s1851 = sld [smem:[#allocation2]]
    %v1852 = vstv %s1851
    %v1853 = vadd.f32 %v1850, %v1852
    %v1854 = vsub.f32 0.0, %v1853
    %v1855 = vmul.f32 %v1854, 1.442695
    %v1856 = vpow.pop %v1855
    %v1857 = vadd.f32 %v1856, 1.0
    %v1858 = vrcp.pop %v1857
    %v1859 = vmul.f32 1.0, %v1858
    %1860 = vst [vmem:[#allocation9] sm:$0x1] %v1859
    // Predicated region
    $region42: #{tpu_custom_call.1} parent=1 // pred_check
      _
    $region43: #{tpu_custom_call.1} parent=1 // pred_check_branch
      %1862 = sbr.rel (0) target = $region45
    $region44: #{tpu_custom_call.1} parent=1 // pred_region
      %s1864 = ssub.s32 16, 16
      %1865 = vsyncadd [#allocation5], %s1864
      %s1867 = sshll.u32 [#allocation9], 4
      %s1868 = int_to_ptr.vmem [resolvable:$true] %s1867
      %1870 = dma.vmem_to_hbm [thread:$0]  %s1868, 16, %s7, [#allocation5]
    $region45: #{tpu_custom_call.1} parent=1 // pred_fallthru
      _
    // Predicated region
    $region46: #{tpu_custom_call.1} parent=1 // pred_check
      _
    $region47: #{tpu_custom_call.1} parent=1 // pred_check_branch
      %1872 = sbr.rel (0) target = $region49
    $region48: #{tpu_custom_call.1} parent=1 // pred_region
      %1873 = dma.done [#allocation5], 16
    $region49: #{tpu_custom_call.1} parent=1 // pred_fallthru
      _
    %1874 = vsyncpa [#allocation4], 1
    %1875 = vsyncpa [#allocation7], 1
    %1876 = vsyncpa [#allocation5], 1

</llo_original>
